<compile_context>
chip_gen: v7x
topology: tpu7x:2x2x1
jax: 0.10.0
libtpu: 0.0.40
codegen_flags: <defaults>
</compile_context>

<pallas_src>
import functools

import jax
import jax.numpy as jnp
from jax import lax
from jax.experimental import pallas as pl
from jax.experimental.pallas import tpu as pltpu


def bilstm_kernel(x_ref, wx_ref, bx_ref, whf_ref, whb_ref, wl_ref, bl_ref,
                  y_ref, gx_ref, hc_ref, *, T, Bp, H, unroll):
    """Fused bidirectional LSTM + Linear.

    x_ref  : (T*Bp, I)   bf16, row t*Bp+b holds x(t, b, :)
    wx_ref : (I, 8H)     bf16, columns [fwd(i,f,o,g) | bwd(i,f,o,g)]
    bx_ref : (1, 8H)     f32, combined bias (b_ih + b_hh), same column layout
    whf_ref: (H, 4H)     f32, forward recurrent weights, gate order (i,f,o,g)
    whb_ref: (H, 4H)     f32, backward recurrent weights, gate order (i,f,o,g)
    wl_ref : (2H, Op)    bf16, final linear ([fwd; bwd] rows), output padded to Op lanes
    bl_ref : (1, Op)     f32
    y_ref  : (T*Bp, Op)  f32
    gx_ref : (T*Bp, 8H)  f32 scratch: precomputed input gates (both dirs at original time t)
    hc_ref : (T*Bp, 2H)  f32 scratch: concatenated [h_fwd | h_bwd] per (t, b)
    """
    H3 = 3 * H
    H4 = 4 * H

    # 1) Hoisted input projection for all timesteps & both directions:
    #    one zero-free bf16 MXU matmul (f32 accumulate) outside the serial chain.
    gx_ref[...] = (
        jnp.dot(x_ref[...], wx_ref[...], preferred_element_type=jnp.float32)
        + bx_ref[...]
    )

    whf = whf_ref[...]   # stay resident across the time loop
    whb = whb_ref[...]

    def step(t, carry):
        hf, cf, hb, cb = carry                 # each (Bp, H) f32
        rt = T - 1 - t
        row_t = pl.multiple_of(t * Bp, Bp)
        row_r = pl.multiple_of(rt * Bp, Bp)

        # Per-direction recurrent matmuls on the serial critical path (no zero blocks).
        ghf = jnp.dot(hf, whf, preferred_element_type=jnp.float32)      # (Bp, 4H)
        ghb = jnp.dot(hb, whb, preferred_element_type=jnp.float32)      # (Bp, 4H)

        # fwd gates live at original time t, bwd gates at original time T-1-t,
        # so the reversed input sequence is never materialized / DMA'd.
        gf = ghf + gx_ref[pl.ds(row_t, Bp), 0:H4]
        gb = ghb + gx_ref[pl.ds(row_r, Bp), H4:2 * H4]

        # Gate order (i, f, o, g): one contiguous sigmoid slab per direction.
        sf = jax.nn.sigmoid(gf[:, 0:H3])
        tgf = jnp.tanh(gf[:, H3:H4])
        sb = jax.nn.sigmoid(gb[:, 0:H3])
        tgb = jnp.tanh(gb[:, H3:H4])

        cf_new = sf[:, H:2 * H] * cf + sf[:, 0:H] * tgf
        hf_new = sf[:, 2 * H:H3] * jnp.tanh(cf_new)
        cb_new = sb[:, H:2 * H] * cb + sb[:, 0:H] * tgb
        hb_new = sb[:, 2 * H:H3] * jnp.tanh(cb_new)

        # Scatter directly into the concatenated layout (fwd half -> time t, bwd half ->
        # original time T-1-t).  At small H these are masked partial stores; lane-dense
        # (H multiple of 128, i.e. production H=256) makes them full unmasked vst.
        hc_ref[pl.ds(row_t, Bp), 0:H] = hf_new
        hc_ref[pl.ds(row_r, Bp), H:2 * H] = hb_new
        return (hf_new, cf_new, hb_new, cb_new)

    z = jnp.zeros((Bp, H), jnp.float32)
    # Toy T: fully unrolled; production T: bounded unroll to avoid vreg spill churn.
    lax.fori_loop(0, T, step, (z, z, z, z), unroll=unroll)

    # 2) Final Linear over [h_fwd ; h_bwd] as one flat, lane-dense bf16 matmul.
    y_ref[...] = (
        jnp.dot(hc_ref[...].astype(jnp.bfloat16), wl_ref[...],
                preferred_element_type=jnp.float32)
        + bl_ref[...]
    ).astype(y_ref.dtype)


def _reorder_ifog(w, H):
    """(..., 4H) PyTorch gate order (i, f, g, o) -> kernel order (i, f, o, g)."""
    return jnp.concatenate(
        [w[..., 0:2 * H], w[..., 3 * H:4 * H], w[..., 2 * H:3 * H]], axis=-1)


def bidirectional_lstm(x, params, hidden_size):
    T, B, I = x.shape
    H = hidden_size
    O = params["w_lin"].shape[1]

    LANE = 128
    SUBLANE = 8
    Bp = ((B + SUBLANE - 1) // SUBLANE) * SUBLANE      # pad batch to sublane width
    Op = ((O + LANE - 1) // LANE) * LANE               # lane-dense output store

    # --- wrapper-side layout plumbing (cheap XLA ops, outside the kernel) ---
    xp = jnp.pad(x, ((0, 0), (0, Bp - B), (0, 0)))                       # (T, Bp, I)
    x_flat = xp.reshape(T * Bp, I).astype(jnp.bfloat16)                  # bf16 halves DMA

    wx = jnp.concatenate(
        [_reorder_ifog(params["wih_f"], H), _reorder_ifog(params["wih_b"], H)],
        axis=-1).astype(jnp.bfloat16)                                    # (I, 8H)
    bx = jnp.concatenate(
        [_reorder_ifog(params["b_f"], H), _reorder_ifog(params["b_b"], H)],
        axis=-1)                                                         # (1, 8H) f32
    whf = _reorder_ifog(params["whh_f"], H)                              # (H, 4H) f32
    whb = _reorder_ifog(params["whh_b"], H)                              # (H, 4H) f32
    wl = jnp.pad(params["w_lin"], ((0, 0), (0, Op - O))).astype(jnp.bfloat16)  # (2H, Op)
    bl = jnp.pad(params["b_lin"], ((0, 0), (0, Op - O)))                 # (1, Op) f32

    unroll = T if T <= 8 else 4   # bounded unroll at production T (sweep 2-4)

    vmem = pl.BlockSpec(memory_space=pltpu.MemorySpace.VMEM)
    y_flat = pl.pallas_call(
        functools.partial(bilstm_kernel, T=T, Bp=Bp, H=H, unroll=unroll),
        out_shape=jax.ShapeDtypeStruct((T * Bp, Op), jnp.float32),
        in_specs=[vmem] * 7,
        out_specs=vmem,
        scratch_shapes=[
            pltpu.VMEM((T * Bp, 8 * H), jnp.float32),   # precomputed input gates
            pltpu.VMEM((T * Bp, 2 * H), jnp.float32),   # concatenated hidden states
        ],
        compiler_params=pltpu.CompilerParams(vmem_limit_bytes=64 * 1024 * 1024),
    )(x_flat, wx, bx, whf, whb, wl, bl)

    return y_flat.reshape(T, Bp, Op)[:, :B, :O]


def make_params(key, input_size, hidden_size, output_size):
    """Deterministic init mirroring PyTorch's uniform(-1/sqrt(fan), 1/sqrt(fan))."""
    ks = jax.random.split(key, 10)
    kl = 1.0 / jnp.sqrt(hidden_size)
    klin = 1.0 / jnp.sqrt(2.0 * hidden_size)

    def u(k, shape, bound):
        return jax.random.uniform(k, shape, jnp.float32, -bound, bound)

    H, I, O = hidden_size, input_size, output_size
    params = {
        # pre-transposed: (I, 4H) / (H, 4H); combined bias (b_ih + b_hh) as (1, 4H);
        # gate column order is PyTorch's (i, f, g, o)
        "wih_f": u(ks[0], (I, 4 * H), kl),
        "whh_f": u(ks[1], (H, 4 * H), kl),
        "b_f": u(ks[2], (1, 4 * H), kl) + u(ks[3], (1, 4 * H), kl),
        "wih_b": u(ks[4], (I, 4 * H), kl),
        "whh_b": u(ks[5], (H, 4 * H), kl),
        "b_b": u(ks[6], (1, 4 * H), kl) + u(ks[7], (1, 4 * H), kl),
        "w_lin": u(ks[8], (2 * H, O), klin),
        "b_lin": u(ks[9], (1, O), klin),
    }
    return params


def reference(x, params):
    """Pure-JAX f32 reference of the PyTorch forward pass (for correctness check)."""
    H = params["whh_f"].shape[0]
    B = x.shape[1]

    def direction(x_seq, wih, whh, b):
        def scan_fn(carry, x_t):
            h, c = carry
            gates = x_t @ wih + h @ whh + b
            i, f, g, o = jnp.split(gates, 4, axis=-1)
            i, f, o = jax.nn.sigmoid(i), jax.nn.sigmoid(f), jax.nn.sigmoid(o)
            g = jnp.tanh(g)
            c = f * c + i * g
            h = o * jnp.tanh(c)
            return (h, c), h

        init = (jnp.zeros((B, H), jnp.float32), jnp.zeros((B, H), jnp.float32))
        _, hs = lax.scan(scan_fn, init, x_seq)
        return hs

    hf = direction(x, params["wih_f"], params["whh_f"], params["b_f"])
    hb = direction(x[::-1], params["wih_b"], params["whh_b"], params["b_b"])[::-1]
    hcat = jnp.concatenate([hf, hb], axis=-1)
    return hcat @ params["w_lin"] + params["b_lin"]


if __name__ == "__main__":
    T, B = 8, 2                       # seq length, batch
    input_size, hidden_size, output_size = 16, 32, 16

    key = jax.random.PRNGKey(0)
    kx, kp = jax.random.split(key)
    x = jax.random.normal(kx, (T, B, input_size), jnp.float32)
    params = make_params(kp, input_size, hidden_size, output_size)

    y = jax.block_until_ready(bidirectional_lstm(x, params, hidden_size))
    y_ref = jax.block_until_ready(reference(x, params))

    assert y.shape == (T, B, output_size)
    # bf16 MXU operands in the hoisted projection / final Linear -> loosened tolerance
    # vs. the f32 reference; structural/layout bugs would show up as O(0.1-1) errors.
    assert jnp.allclose(y, y_ref, atol=3e-2, rtol=3e-2), "mismatch vs JAX reference"

    print("KERNEL_OK")
</pallas_src>

<mosaic_0001>
module attributes {stable_mosaic.version = 11 : i64} {
  func.func @bilstm_kernel(%arg0: memref<64x16xbf16, #tpu.memory_space<vmem>>, %arg1: memref<16x256xbf16, #tpu.memory_space<vmem>>, %arg2: memref<1x256xf32, #tpu.memory_space<vmem>>, %arg3: memref<32x128xf32, #tpu.memory_space<vmem>>, %arg4: memref<32x128xf32, #tpu.memory_space<vmem>>, %arg5: memref<64x128xbf16, #tpu.memory_space<vmem>>, %arg6: memref<1x128xf32, #tpu.memory_space<vmem>>, %arg7: memref<64x128xf32, #tpu.memory_space<vmem>>, %arg8: memref<64x256xf32, #tpu.memory_space<vmem>>, %arg9: memref<64x64xf32, #tpu.memory_space<vmem>>) attributes {dimension_semantics = [], scalar_prefetch = 0 : i64, scratch_operands = 2 : i64, tpu.core_type = #tpu.core_type<tc>} {
    %c0 = arith.constant 0 : index
    %c0_0 = arith.constant 0 : index
    %0 = vector.load %arg0[%c0, %c0_0] : memref<64x16xbf16, #tpu.memory_space<vmem>>, vector<64x16xbf16>
    %c0_1 = arith.constant 0 : index
    %c0_2 = arith.constant 0 : index
    %1 = vector.load %arg1[%c0_1, %c0_2] : memref<16x256xbf16, #tpu.memory_space<vmem>>, vector<16x256xbf16>
    %cst = arith.constant dense<0.000000e+00> : vector<64x256xf32>
    %2 = tpu.matmul %0, %1, %cst {dimension_numbers = #tpu.dot_dimension_numbers<[1], [0], [0], [1], [0, 0, 1, 1], [], []>} : vector<64x16xbf16>, vector<16x256xbf16>, vector<64x256xf32> -> vector<64x256xf32>
    %c0_3 = arith.constant 0 : index
    %c0_4 = arith.constant 0 : index
    %3 = vector.load %arg2[%c0_3, %c0_4] : memref<1x256xf32, #tpu.memory_space<vmem>>, vector<1x256xf32>
    %4 = vector.broadcast %3 : vector<1x256xf32> to vector<64x256xf32>
    %5 = arith.addf %2, %4 : vector<64x256xf32>
    %c0_5 = arith.constant 0 : index
    %c0_6 = arith.constant 0 : index
    %6 = vector.load %arg8[%c0_5, %c0_6] : memref<64x256xf32, #tpu.memory_space<vmem>>, vector<64x256xf32>
    tpu.vector_store %arg8[%c0_5, %c0_6], %5 {strides = array<i32>} : memref<64x256xf32, #tpu.memory_space<vmem>>, vector<64x256xf32>,
    %c0_7 = arith.constant 0 : index
    %c0_8 = arith.constant 0 : index
    %7 = vector.load %arg3[%c0_7, %c0_8] : memref<32x128xf32, #tpu.memory_space<vmem>>, vector<32x128xf32>
    %c0_9 = arith.constant 0 : index
    %c0_10 = arith.constant 0 : index
    %8 = vector.load %arg4[%c0_9, %c0_10] : memref<32x128xf32, #tpu.memory_space<vmem>>, vector<32x128xf32>
    %cst_11 = arith.constant 0.000000e+00 : f32
    %9 = vector.broadcast %cst_11 : f32 to vector<8x32xf32>
    %c0_i32 = arith.constant 0 : i32
    %c7_i32 = arith.constant 7 : i32
    %10 = arith.subi %c7_i32, %c0_i32 : i32
    %c8_i32 = arith.constant 8 : i32
    %11 = arith.muli %c0_i32, %c8_i32 : i32
    %12 = tpu.assume_multiple %11, 8 : i32
    %c8_i32_12 = arith.constant 8 : i32
    %13 = arith.muli %10, %c8_i32_12 : i32
    %14 = tpu.assume_multiple %13, 8 : i32
    %cst_13 = arith.constant dense<0.000000e+00> : vector<8x128xf32>
    %15 = tpu.matmul %9, %7, %cst_13 {dimension_numbers = #tpu.dot_dimension_numbers<[1], [0], [0], [1], [0, 0, 1, 1], [], []>} : vector<8x32xf32>, vector<32x128xf32>, vector<8x128xf32> -> vector<8x128xf32>
    %cst_14 = arith.constant dense<0.000000e+00> : vector<8x128xf32>
    %16 = tpu.matmul %9, %8, %cst_14 {dimension_numbers = #tpu.dot_dimension_numbers<[1], [0], [0], [1], [0, 0, 1, 1], [], []>} : vector<8x32xf32>, vector<32x128xf32>, vector<8x128xf32> -> vector<8x128xf32>
    %17 = arith.index_cast %12 : i32 to index
    %c0_15 = arith.constant 0 : index
    %18 = vector.load %arg8[%17, %c0_15] : memref<64x256xf32, #tpu.memory_space<vmem>>, vector<8x128xf32>
    %19 = arith.addf %15, %18 : vector<8x128xf32>
    %20 = arith.index_cast %14 : i32 to index
    %c128 = arith.constant 128 : index
    %21 = vector.load %arg8[%20, %c128] : memref<64x256xf32, #tpu.memory_space<vmem>>, vector<8x128xf32>
    %22 = arith.addf %16, %21 : vector<8x128xf32>
    %23 = vector.extract_strided_slice %19 {offsets = [0, 0], sizes = [8, 96], strides = [1, 1]} : vector<8x128xf32> to vector<8x96xf32>
    %24 = arith.negf %23 : vector<8x96xf32>
    %25 = math.exp %24 : vector<8x96xf32>
    %cst_16 = arith.constant 1.000000e+00 : f32
    %26 = vector.broadcast %cst_16 : f32 to vector<8x96xf32>
    %27 = arith.addf %26, %25 : vector<8x96xf32>
    %28 = arith.divf %26, %27 : vector<8x96xf32>
    %29 = vector.extract_strided_slice %19 {offsets = [0, 96], sizes = [8, 32], strides = [1, 1]} : vector<8x128xf32> to vector<8x32xf32>
    %30 = math.tanh %29 : vector<8x32xf32>
    %31 = vector.extract_strided_slice %22 {offsets = [0, 0], sizes = [8, 96], strides = [1, 1]} : vector<8x128xf32> to vector<8x96xf32>
    %32 = arith.negf %31 : vector<8x96xf32>
    %33 = math.exp %32 : vector<8x96xf32>
    %cst_17 = arith.constant 1.000000e+00 : f32
    %34 = vector.broadcast %cst_17 : f32 to vector<8x96xf32>
    %35 = arith.addf %34, %33 : vector<8x96xf32>
    %36 = arith.divf %34, %35 : vector<8x96xf32>
    %37 = vector.extract_strided_slice %22 {offsets = [0, 96], sizes = [8, 32], strides = [1, 1]} : vector<8x128xf32> to vector<8x32xf32>
    %38 = math.tanh %37 : vector<8x32xf32>
    %39 = vector.extract_strided_slice %28 {offsets = [0, 32], sizes = [8, 32], strides = [1, 1]} : vector<8x96xf32> to vector<8x32xf32>
    %40 = arith.mulf %39, %9 : vector<8x32xf32>
    %41 = vector.extract_strided_slice %28 {offsets = [0, 0], sizes = [8, 32], strides = [1, 1]} : vector<8x96xf32> to vector<8x32xf32>
    %42 = arith.mulf %41, %30 : vector<8x32xf32>
    %43 = arith.addf %40, %42 : vector<8x32xf32>
    %44 = vector.extract_strided_slice %28 {offsets = [0, 64], sizes = [8, 32], strides = [1, 1]} : vector<8x96xf32> to vector<8x32xf32>
    %45 = math.tanh %43 : vector<8x32xf32>
    %46 = arith.mulf %44, %45 : vector<8x32xf32>
    %47 = vector.extract_strided_slice %36 {offsets = [0, 32], sizes = [8, 32], strides = [1, 1]} : vector<8x96xf32> to vector<8x32xf32>
    %48 = arith.mulf %47, %9 : vector<8x32xf32>
    %49 = vector.extract_strided_slice %36 {offsets = [0, 0], sizes = [8, 32], strides = [1, 1]} : vector<8x96xf32> to vector<8x32xf32>
    %50 = arith.mulf %49, %38 : vector<8x32xf32>
    %51 = arith.addf %48, %50 : vector<8x32xf32>
    %52 = vector.extract_strided_slice %36 {offsets = [0, 64], sizes = [8, 32], strides = [1, 1]} : vector<8x96xf32> to vector<8x32xf32>
    %53 = math.tanh %51 : vector<8x32xf32>
    %54 = arith.mulf %52, %53 : vector<8x32xf32>
    %55 = arith.index_cast %12 : i32 to index
    %c0_18 = arith.constant 0 : index
    %56 = vector.load %arg9[%55, %c0_18] : memref<64x64xf32, #tpu.memory_space<vmem>>, vector<8x32xf32>
    tpu.vector_store %arg9[%55, %c0_18], %46 {strides = array<i32>} : memref<64x64xf32, #tpu.memory_space<vmem>>, vector<8x32xf32>,
    %57 = arith.index_cast %14 : i32 to index
    %c32 = arith.constant 32 : index
    %58 = vector.load %arg9[%57, %c32] : memref<64x64xf32, #tpu.memory_space<vmem>>, vector<8x32xf32>
    tpu.vector_store %arg9[%57, %c32], %54 {strides = array<i32>} : memref<64x64xf32, #tpu.memory_space<vmem>>, vector<8x32xf32>,
    %c1_i32 = arith.constant 1 : i32
    %c7_i32_19 = arith.constant 7 : i32
    %59 = arith.subi %c7_i32_19, %c1_i32 : i32
    %c8_i32_20 = arith.constant 8 : i32
    %60 = arith.muli %c1_i32, %c8_i32_20 : i32
    %61 = tpu.assume_multiple %60, 8 : i32
    %c8_i32_21 = arith.constant 8 : i32
    %62 = arith.muli %59, %c8_i32_21 : i32
    %63 = tpu.assume_multiple %62, 8 : i32
    %cst_22 = arith.constant dense<0.000000e+00> : vector<8x128xf32>
    %64 = tpu.matmul %46, %7, %cst_22 {dimension_numbers = #tpu.dot_dimension_numbers<[1], [0], [0], [1], [0, 0, 1, 1], [], []>} : vector<8x32xf32>, vector<32x128xf32>, vector<8x128xf32> -> vector<8x128xf32>
    %cst_23 = arith.constant dense<0.000000e+00> : vector<8x128xf32>
    %65 = tpu.matmul %54, %8, %cst_23 {dimension_numbers = #tpu.dot_dimension_numbers<[1], [0], [0], [1], [0, 0, 1, 1], [], []>} : vector<8x32xf32>, vector<32x128xf32>, vector<8x128xf32> -> vector<8x128xf32>
    %66 = arith.index_cast %61 : i32 to index
    %c0_24 = arith.constant 0 : index
    %67 = vector.load %arg8[%66, %c0_24] : memref<64x256xf32, #tpu.memory_space<vmem>>, vector<8x128xf32>
    %68 = arith.addf %64, %67 : vector<8x128xf32>
    %69 = arith.index_cast %63 : i32 to index
    %c128_25 = arith.constant 128 : index
    %70 = vector.load %arg8[%69, %c128_25] : memref<64x256xf32, #tpu.memory_space<vmem>>, vector<8x128xf32>
    %71 = arith.addf %65, %70 : vector<8x128xf32>
    %72 = vector.extract_strided_slice %68 {offsets = [0, 0], sizes = [8, 96], strides = [1, 1]} : vector<8x128xf32> to vector<8x96xf32>
    %73 = arith.negf %72 : vector<8x96xf32>
    %74 = math.exp %73 : vector<8x96xf32>
    %cst_26 = arith.constant 1.000000e+00 : f32
    %75 = vector.broadcast %cst_26 : f32 to vector<8x96xf32>
    %76 = arith.addf %75, %74 : vector<8x96xf32>
    %77 = arith.divf %75, %76 : vector<8x96xf32>
    %78 = vector.extract_strided_slice %68 {offsets = [0, 96], sizes = [8, 32], strides = [1, 1]} : vector<8x128xf32> to vector<8x32xf32>
    %79 = math.tanh %78 : vector<8x32xf32>
    %80 = vector.extract_strided_slice %71 {offsets = [0, 0], sizes = [8, 96], strides = [1, 1]} : vector<8x128xf32> to vector<8x96xf32>
    %81 = arith.negf %80 : vector<8x96xf32>
    %82 = math.exp %81 : vector<8x96xf32>
    %cst_27 = arith.constant 1.000000e+00 : f32
    %83 = vector.broadcast %cst_27 : f32 to vector<8x96xf32>
    %84 = arith.addf %83, %82 : vector<8x96xf32>
    %85 = arith.divf %83, %84 : vector<8x96xf32>
    %86 = vector.extract_strided_slice %71 {offsets = [0, 96], sizes = [8, 32], strides = [1, 1]} : vector<8x128xf32> to vector<8x32xf32>
    %87 = math.tanh %86 : vector<8x32xf32>
    %88 = vector.extract_strided_slice %77 {offsets = [0, 32], sizes = [8, 32], strides = [1, 1]} : vector<8x96xf32> to vector<8x32xf32>
    %89 = arith.mulf %88, %43 : vector<8x32xf32>
    %90 = vector.extract_strided_slice %77 {offsets = [0, 0], sizes = [8, 32], strides = [1, 1]} : vector<8x96xf32> to vector<8x32xf32>
    %91 = arith.mulf %90, %79 : vector<8x32xf32>
    %92 = arith.addf %89, %91 : vector<8x32xf32>
    %93 = vector.extract_strided_slice %77 {offsets = [0, 64], sizes = [8, 32], strides = [1, 1]} : vector<8x96xf32> to vector<8x32xf32>
    %94 = math.tanh %92 : vector<8x32xf32>
    %95 = arith.mulf %93, %94 : vector<8x32xf32>
    %96 = vector.extract_strided_slice %85 {offsets = [0, 32], sizes = [8, 32], strides = [1, 1]} : vector<8x96xf32> to vector<8x32xf32>
    %97 = arith.mulf %96, %51 : vector<8x32xf32>
    %98 = vector.extract_strided_slice %85 {offsets = [0, 0], sizes = [8, 32], strides = [1, 1]} : vector<8x96xf32> to vector<8x32xf32>
    %99 = arith.mulf %98, %87 : vector<8x32xf32>
    %100 = arith.addf %97, %99 : vector<8x32xf32>
    %101 = vector.extract_strided_slice %85 {offsets = [0, 64], sizes = [8, 32], strides = [1, 1]} : vector<8x96xf32> to vector<8x32xf32>
    %102 = math.tanh %100 : vector<8x32xf32>
    %103 = arith.mulf %101, %102 : vector<8x32xf32>
    %104 = arith.index_cast %61 : i32 to index
    %c0_28 = arith.constant 0 : index
    %105 = vector.load %arg9[%104, %c0_28] : memref<64x64xf32, #tpu.memory_space<vmem>>, vector<8x32xf32>
    tpu.vector_store %arg9[%104, %c0_28], %95 {strides = array<i32>} : memref<64x64xf32, #tpu.memory_space<vmem>>, vector<8x32xf32>,
    %106 = arith.index_cast %63 : i32 to index
    %c32_29 = arith.constant 32 : index
    %107 = vector.load %arg9[%106, %c32_29] : memref<64x64xf32, #tpu.memory_space<vmem>>, vector<8x32xf32>
    tpu.vector_store %arg9[%106, %c32_29], %103 {strides = array<i32>} : memref<64x64xf32, #tpu.memory_space<vmem>>, vector<8x32xf32>,
    %c2_i32 = arith.constant 2 : i32
    %c7_i32_30 = arith.constant 7 : i32
    %108 = arith.subi %c7_i32_30, %c2_i32 : i32
    %c8_i32_31 = arith.constant 8 : i32
    %109 = arith.muli %c2_i32, %c8_i32_31 : i32
    %110 = tpu.assume_multiple %109, 8 : i32
    %c8_i32_32 = arith.constant 8 : i32
    %111 = arith.muli %108, %c8_i32_32 : i32
    %112 = tpu.assume_multiple %111, 8 : i32
    %cst_33 = arith.constant dense<0.000000e+00> : vector<8x128xf32>
    %113 = tpu.matmul %95, %7, %cst_33 {dimension_numbers = #tpu.dot_dimension_numbers<[1], [0], [0], [1], [0, 0, 1, 1], [], []>} : vector<8x32xf32>, vector<32x128xf32>, vector<8x128xf32> -> vector<8x128xf32>
    %cst_34 = arith.constant dense<0.000000e+00> : vector<8x128xf32>
    %114 = tpu.matmul %103, %8, %cst_34 {dimension_numbers = #tpu.dot_dimension_numbers<[1], [0], [0], [1], [0, 0, 1, 1], [], []>} : vector<8x32xf32>, vector<32x128xf32>, vector<8x128xf32> -> vector<8x128xf32>
    %115 = arith.index_cast %110 : i32 to index
    %c0_35 = arith.constant 0 : index
    %116 = vector.load %arg8[%115, %c0_35] : memref<64x256xf32, #tpu.memory_space<vmem>>, vector<8x128xf32>
    %117 = arith.addf %113, %116 : vector<8x128xf32>
    %118 = arith.index_cast %112 : i32 to index
    %c128_36 = arith.constant 128 : index
    %119 = vector.load %arg8[%118, %c128_36] : memref<64x256xf32, #tpu.memory_space<vmem>>, vector<8x128xf32>
    %120 = arith.addf %114, %119 : vector<8x128xf32>
    %121 = vector.extract_strided_slice %117 {offsets = [0, 0], sizes = [8, 96], strides = [1, 1]} : vector<8x128xf32> to vector<8x96xf32>
    %122 = arith.negf %121 : vector<8x96xf32>
    %123 = math.exp %122 : vector<8x96xf32>
    %cst_37 = arith.constant 1.000000e+00 : f32
    %124 = vector.broadcast %cst_37 : f32 to vector<8x96xf32>
    %125 = arith.addf %124, %123 : vector<8x96xf32>
    %126 = arith.divf %124, %125 : vector<8x96xf32>
    %127 = vector.extract_strided_slice %117 {offsets = [0, 96], sizes = [8, 32], strides = [1, 1]} : vector<8x128xf32> to vector<8x32xf32>
    %128 = math.tanh %127 : vector<8x32xf32>
    %129 = vector.extract_strided_slice %120 {offsets = [0, 0], sizes = [8, 96], strides = [1, 1]} : vector<8x128xf32> to vector<8x96xf32>
    %130 = arith.negf %129 : vector<8x96xf32>
    %131 = math.exp %130 : vector<8x96xf32>
    %cst_38 = arith.constant 1.000000e+00 : f32
    %132 = vector.broadcast %cst_38 : f32 to vector<8x96xf32>
    %133 = arith.addf %132, %131 : vector<8x96xf32>
    %134 = arith.divf %132, %133 : vector<8x96xf32>
    %135 = vector.extract_strided_slice %120 {offsets = [0, 96], sizes = [8, 32], strides = [1, 1]} : vector<8x128xf32> to vector<8x32xf32>
    %136 = math.tanh %135 : vector<8x32xf32>
    %137 = vector.extract_strided_slice %126 {offsets = [0, 32], sizes = [8, 32], strides = [1, 1]} : vector<8x96xf32> to vector<8x32xf32>
    %138 = arith.mulf %137, %92 : vector<8x32xf32>
    %139 = vector.extract_strided_slice %126 {offsets = [0, 0], sizes = [8, 32], strides = [1, 1]} : vector<8x96xf32> to vector<8x32xf32>
    %140 = arith.mulf %139, %128 : vector<8x32xf32>
    %141 = arith.addf %138, %140 : vector<8x32xf32>
    %142 = vector.extract_strided_slice %126 {offsets = [0, 64], sizes = [8, 32], strides = [1, 1]} : vector<8x96xf32> to vector<8x32xf32>
    %143 = math.tanh %141 : vector<8x32xf32>
    %144 = arith.mulf %142, %143 : vector<8x32xf32>
    %145 = vector.extract_strided_slice %134 {offsets = [0, 32], sizes = [8, 32], strides = [1, 1]} : vector<8x96xf32> to vector<8x32xf32>
    %146 = arith.mulf %145, %100 : vector<8x32xf32>
    %147 = vector.extract_strided_slice %134 {offsets = [0, 0], sizes = [8, 32], strides = [1, 1]} : vector<8x96xf32> to vector<8x32xf32>
    %148 = arith.mulf %147, %136 : vector<8x32xf32>
    %149 = arith.addf %146, %148 : vector<8x32xf32>
    %150 = vector.extract_strided_slice %134 {offsets = [0, 64], sizes = [8, 32], strides = [1, 1]} : vector<8x96xf32> to vector<8x32xf32>
    %151 = math.tanh %149 : vector<8x32xf32>
    %152 = arith.mulf %150, %151 : vector<8x32xf32>
    %153 = arith.index_cast %110 : i32 to index
    %c0_39 = arith.constant 0 : index
    %154 = vector.load %arg9[%153, %c0_39] : memref<64x64xf32, #tpu.memory_space<vmem>>, vector<8x32xf32>
    tpu.vector_store %arg9[%153, %c0_39], %144 {strides = array<i32>} : memref<64x64xf32, #tpu.memory_space<vmem>>, vector<8x32xf32>,
    %155 = arith.index_cast %112 : i32 to index
    %c32_40 = arith.constant 32 : index
    %156 = vector.load %arg9[%155, %c32_40] : memref<64x64xf32, #tpu.memory_space<vmem>>, vector<8x32xf32>
    tpu.vector_store %arg9[%155, %c32_40], %152 {strides = array<i32>} : memref<64x64xf32, #tpu.memory_space<vmem>>, vector<8x32xf32>,
    %c3_i32 = arith.constant 3 : i32
    %c7_i32_41 = arith.constant 7 : i32
    %157 = arith.subi %c7_i32_41, %c3_i32 : i32
    %c8_i32_42 = arith.constant 8 : i32
    %158 = arith.muli %c3_i32, %c8_i32_42 : i32
    %159 = tpu.assume_multiple %158, 8 : i32
    %c8_i32_43 = arith.constant 8 : i32
    %160 = arith.muli %157, %c8_i32_43 : i32
    %161 = tpu.assume_multiple %160, 8 : i32
    %cst_44 = arith.constant dense<0.000000e+00> : vector<8x128xf32>
    %162 = tpu.matmul %144, %7, %cst_44 {dimension_numbers = #tpu.dot_dimension_numbers<[1], [0], [0], [1], [0, 0, 1, 1], [], []>} : vector<8x32xf32>, vector<32x128xf32>, vector<8x128xf32> -> vector<8x128xf32>
    %cst_45 = arith.constant dense<0.000000e+00> : vector<8x128xf32>
    %163 = tpu.matmul %152, %8, %cst_45 {dimension_numbers = #tpu.dot_dimension_numbers<[1], [0], [0], [1], [0, 0, 1, 1], [], []>} : vector<8x32xf32>, vector<32x128xf32>, vector<8x128xf32> -> vector<8x128xf32>
    %164 = arith.index_cast %159 : i32 to index
    %c0_46 = arith.constant 0 : index
    %165 = vector.load %arg8[%164, %c0_46] : memref<64x256xf32, #tpu.memory_space<vmem>>, vector<8x128xf32>
    %166 = arith.addf %162, %165 : vector<8x128xf32>
    %167 = arith.index_cast %161 : i32 to index
    %c128_47 = arith.constant 128 : index
    %168 = vector.load %arg8[%167, %c128_47] : memref<64x256xf32, #tpu.memory_space<vmem>>, vector<8x128xf32>
    %169 = arith.addf %163, %168 : vector<8x128xf32>
    %170 = vector.extract_strided_slice %166 {offsets = [0, 0], sizes = [8, 96], strides = [1, 1]} : vector<8x128xf32> to vector<8x96xf32>
    %171 = arith.negf %170 : vector<8x96xf32>
    %172 = math.exp %171 : vector<8x96xf32>
    %cst_48 = arith.constant 1.000000e+00 : f32
    %173 = vector.broadcast %cst_48 : f32 to vector<8x96xf32>
    %174 = arith.addf %173, %172 : vector<8x96xf32>
    %175 = arith.divf %173, %174 : vector<8x96xf32>
    %176 = vector.extract_strided_slice %166 {offsets = [0, 96], sizes = [8, 32], strides = [1, 1]} : vector<8x128xf32> to vector<8x32xf32>
    %177 = math.tanh %176 : vector<8x32xf32>
    %178 = vector.extract_strided_slice %169 {offsets = [0, 0], sizes = [8, 96], strides = [1, 1]} : vector<8x128xf32> to vector<8x96xf32>
    %179 = arith.negf %178 : vector<8x96xf32>
    %180 = math.exp %179 : vector<8x96xf32>
    %cst_49 = arith.constant 1.000000e+00 : f32
    %181 = vector.broadcast %cst_49 : f32 to vector<8x96xf32>
    %182 = arith.addf %181, %180 : vector<8x96xf32>
    %183 = arith.divf %181, %182 : vector<8x96xf32>
    %184 = vector.extract_strided_slice %169 {offsets = [0, 96], sizes = [8, 32], strides = [1, 1]} : vector<8x128xf32> to vector<8x32xf32>
    %185 = math.tanh %184 : vector<8x32xf32>
    %186 = vector.extract_strided_slice %175 {offsets = [0, 32], sizes = [8, 32], strides = [1, 1]} : vector<8x96xf32> to vector<8x32xf32>
    %187 = arith.mulf %186, %141 : vector<8x32xf32>
    %188 = vector.extract_strided_slice %175 {offsets = [0, 0], sizes = [8, 32], strides = [1, 1]} : vector<8x96xf32> to vector<8x32xf32>
    %189 = arith.mulf %188, %177 : vector<8x32xf32>
    %190 = arith.addf %187, %189 : vector<8x32xf32>
    %191 = vector.extract_strided_slice %175 {offsets = [0, 64], sizes = [8, 32], strides = [1, 1]} : vector<8x96xf32> to vector<8x32xf32>
    %192 = math.tanh %190 : vector<8x32xf32>
    %193 = arith.mulf %191, %192 : vector<8x32xf32>
    %194 = vector.extract_strided_slice %183 {offsets = [0, 32], sizes = [8, 32], strides = [1, 1]} : vector<8x96xf32> to vector<8x32xf32>
    %195 = arith.mulf %194, %149 : vector<8x32xf32>
    %196 = vector.extract_strided_slice %183 {offsets = [0, 0], sizes = [8, 32], strides = [1, 1]} : vector<8x96xf32> to vector<8x32xf32>
    %197 = arith.mulf %196, %185 : vector<8x32xf32>
    %198 = arith.addf %195, %197 : vector<8x32xf32>
    %199 = vector.extract_strided_slice %183 {offsets = [0, 64], sizes = [8, 32], strides = [1, 1]} : vector<8x96xf32> to vector<8x32xf32>
    %200 = math.tanh %198 : vector<8x32xf32>
    %201 = arith.mulf %199, %200 : vector<8x32xf32>
    %202 = arith.index_cast %159 : i32 to index
    %c0_50 = arith.constant 0 : index
    %203 = vector.load %arg9[%202, %c0_50] : memref<64x64xf32, #tpu.memory_space<vmem>>, vector<8x32xf32>
    tpu.vector_store %arg9[%202, %c0_50], %193 {strides = array<i32>} : memref<64x64xf32, #tpu.memory_space<vmem>>, vector<8x32xf32>,
    %204 = arith.index_cast %161 : i32 to index
    %c32_51 = arith.constant 32 : index
    %205 = vector.load %arg9[%204, %c32_51] : memref<64x64xf32, #tpu.memory_space<vmem>>, vector<8x32xf32>
    tpu.vector_store %arg9[%204, %c32_51], %201 {strides = array<i32>} : memref<64x64xf32, #tpu.memory_space<vmem>>, vector<8x32xf32>,
    %c4_i32 = arith.constant 4 : i32
    %c7_i32_52 = arith.constant 7 : i32
    %206 = arith.subi %c7_i32_52, %c4_i32 : i32
    %c8_i32_53 = arith.constant 8 : i32
    %207 = arith.muli %c4_i32, %c8_i32_53 : i32
    %208 = tpu.assume_multiple %207, 8 : i32
    %c8_i32_54 = arith.constant 8 : i32
    %209 = arith.muli %206, %c8_i32_54 : i32
    %210 = tpu.assume_multiple %209, 8 : i32
    %cst_55 = arith.constant dense<0.000000e+00> : vector<8x128xf32>
    %211 = tpu.matmul %193, %7, %cst_55 {dimension_numbers = #tpu.dot_dimension_numbers<[1], [0], [0], [1], [0, 0, 1, 1], [], []>} : vector<8x32xf32>, vector<32x128xf32>, vector<8x128xf32> -> vector<8x128xf32>
    %cst_56 = arith.constant dense<0.000000e+00> : vector<8x128xf32>
    %212 = tpu.matmul %201, %8, %cst_56 {dimension_numbers = #tpu.dot_dimension_numbers<[1], [0], [0], [1], [0, 0, 1, 1], [], []>} : vector<8x32xf32>, vector<32x128xf32>, vector<8x128xf32> -> vector<8x128xf32>
    %213 = arith.index_cast %208 : i32 to index
    %c0_57 = arith.constant 0 : index
    %214 = vector.load %arg8[%213, %c0_57] : memref<64x256xf32, #tpu.memory_space<vmem>>, vector<8x128xf32>
    %215 = arith.addf %211, %214 : vector<8x128xf32>
    %216 = arith.index_cast %210 : i32 to index
    %c128_58 = arith.constant 128 : index
    %217 = vector.load %arg8[%216, %c128_58] : memref<64x256xf32, #tpu.memory_space<vmem>>, vector<8x128xf32>
    %218 = arith.addf %212, %217 : vector<8x128xf32>
    %219 = vector.extract_strided_slice %215 {offsets = [0, 0], sizes = [8, 96], strides = [1, 1]} : vector<8x128xf32> to vector<8x96xf32>
    %220 = arith.negf %219 : vector<8x96xf32>
    %221 = math.exp %220 : vector<8x96xf32>
    %cst_59 = arith.constant 1.000000e+00 : f32
    %222 = vector.broadcast %cst_59 : f32 to vector<8x96xf32>
    %223 = arith.addf %222, %221 : vector<8x96xf32>
    %224 = arith.divf %222, %223 : vector<8x96xf32>
    %225 = vector.extract_strided_slice %215 {offsets = [0, 96], sizes = [8, 32], strides = [1, 1]} : vector<8x128xf32> to vector<8x32xf32>
    %226 = math.tanh %225 : vector<8x32xf32>
    %227 = vector.extract_strided_slice %218 {offsets = [0, 0], sizes = [8, 96], strides = [1, 1]} : vector<8x128xf32> to vector<8x96xf32>
    %228 = arith.negf %227 : vector<8x96xf32>
    %229 = math.exp %228 : vector<8x96xf32>
    %cst_60 = arith.constant 1.000000e+00 : f32
    %230 = vector.broadcast %cst_60 : f32 to vector<8x96xf32>
    %231 = arith.addf %230, %229 : vector<8x96xf32>
    %232 = arith.divf %230, %231 : vector<8x96xf32>
    %233 = vector.extract_strided_slice %218 {offsets = [0, 96], sizes = [8, 32], strides = [1, 1]} : vector<8x128xf32> to vector<8x32xf32>
    %234 = math.tanh %233 : vector<8x32xf32>
    %235 = vector.extract_strided_slice %224 {offsets = [0, 32], sizes = [8, 32], strides = [1, 1]} : vector<8x96xf32> to vector<8x32xf32>
    %236 = arith.mulf %235, %190 : vector<8x32xf32>
    %237 = vector.extract_strided_slice %224 {offsets = [0, 0], sizes = [8, 32], strides = [1, 1]} : vector<8x96xf32> to vector<8x32xf32>
    %238 = arith.mulf %237, %226 : vector<8x32xf32>
    %239 = arith.addf %236, %238 : vector<8x32xf32>
    %240 = vector.extract_strided_slice %224 {offsets = [0, 64], sizes = [8, 32], strides = [1, 1]} : vector<8x96xf32> to vector<8x32xf32>
    %241 = math.tanh %239 : vector<8x32xf32>
    %242 = arith.mulf %240, %241 : vector<8x32xf32>
    %243 = vector.extract_strided_slice %232 {offsets = [0, 32], sizes = [8, 32], strides = [1, 1]} : vector<8x96xf32> to vector<8x32xf32>
    %244 = arith.mulf %243, %198 : vector<8x32xf32>
    %245 = vector.extract_strided_slice %232 {offsets = [0, 0], sizes = [8, 32], strides = [1, 1]} : vector<8x96xf32> to vector<8x32xf32>
    %246 = arith.mulf %245, %234 : vector<8x32xf32>
    %247 = arith.addf %244, %246 : vector<8x32xf32>
    %248 = vector.extract_strided_slice %232 {offsets = [0, 64], sizes = [8, 32], strides = [1, 1]} : vector<8x96xf32> to vector<8x32xf32>
    %249 = math.tanh %247 : vector<8x32xf32>
    %250 = arith.mulf %248, %249 : vector<8x32xf32>
    %251 = arith.index_cast %208 : i32 to index
    %c0_61 = arith.constant 0 : index
    %252 = vector.load %arg9[%251, %c0_61] : memref<64x64xf32, #tpu.memory_space<vmem>>, vector<8x32xf32>
    tpu.vector_store %arg9[%251, %c0_61], %242 {strides = array<i32>} : memref<64x64xf32, #tpu.memory_space<vmem>>, vector<8x32xf32>,
    %253 = arith.index_cast %210 : i32 to index
    %c32_62 = arith.constant 32 : index
    %254 = vector.load %arg9[%253, %c32_62] : memref<64x64xf32, #tpu.memory_space<vmem>>, vector<8x32xf32>
    tpu.vector_store %arg9[%253, %c32_62], %250 {strides = array<i32>} : memref<64x64xf32, #tpu.memory_space<vmem>>, vector<8x32xf32>,
    %c5_i32 = arith.constant 5 : i32
    %c7_i32_63 = arith.constant 7 : i32
    %255 = arith.subi %c7_i32_63, %c5_i32 : i32
    %c8_i32_64 = arith.constant 8 : i32
    %256 = arith.muli %c5_i32, %c8_i32_64 : i32
    %257 = tpu.assume_multiple %256, 8 : i32
    %c8_i32_65 = arith.constant 8 : i32
    %258 = arith.muli %255, %c8_i32_65 : i32
    %259 = tpu.assume_multiple %258, 8 : i32
    %cst_66 = arith.constant dense<0.000000e+00> : vector<8x128xf32>
    %260 = tpu.matmul %242, %7, %cst_66 {dimension_numbers = #tpu.dot_dimension_numbers<[1], [0], [0], [1], [0, 0, 1, 1], [], []>} : vector<8x32xf32>, vector<32x128xf32>, vector<8x128xf32> -> vector<8x128xf32>
    %cst_67 = arith.constant dense<0.000000e+00> : vector<8x128xf32>
    %261 = tpu.matmul %250, %8, %cst_67 {dimension_numbers = #tpu.dot_dimension_numbers<[1], [0], [0], [1], [0, 0, 1, 1], [], []>} : vector<8x32xf32>, vector<32x128xf32>, vector<8x128xf32> -> vector<8x128xf32>
    %262 = arith.index_cast %257 : i32 to index
    %c0_68 = arith.constant 0 : index
    %263 = vector.load %arg8[%262, %c0_68] : memref<64x256xf32, #tpu.memory_space<vmem>>, vector<8x128xf32>
    %264 = arith.addf %260, %263 : vector<8x128xf32>
    %265 = arith.index_cast %259 : i32 to index
    %c128_69 = arith.constant 128 : index
    %266 = vector.load %arg8[%265, %c128_69] : memref<64x256xf32, #tpu.memory_space<vmem>>, vector<8x128xf32>
    %267 = arith.addf %261, %266 : vector<8x128xf32>
    %268 = vector.extract_strided_slice %264 {offsets = [0, 0], sizes = [8, 96], strides = [1, 1]} : vector<8x128xf32> to vector<8x96xf32>
    %269 = arith.negf %268 : vector<8x96xf32>
    %270 = math.exp %269 : vector<8x96xf32>
    %cst_70 = arith.constant 1.000000e+00 : f32
    %271 = vector.broadcast %cst_70 : f32 to vector<8x96xf32>
    %272 = arith.addf %271, %270 : vector<8x96xf32>
    %273 = arith.divf %271, %272 : vector<8x96xf32>
    %274 = vector.extract_strided_slice %264 {offsets = [0, 96], sizes = [8, 32], strides = [1, 1]} : vector<8x128xf32> to vector<8x32xf32>
    %275 = math.tanh %274 : vector<8x32xf32>
    %276 = vector.extract_strided_slice %267 {offsets = [0, 0], sizes = [8, 96], strides = [1, 1]} : vector<8x128xf32> to vector<8x96xf32>
    %277 = arith.negf %276 : vector<8x96xf32>
    %278 = math.exp %277 : vector<8x96xf32>
    %cst_71 = arith.constant 1.000000e+00 : f32
    %279 = vector.broadcast %cst_71 : f32 to vector<8x96xf32>
    %280 = arith.addf %279, %278 : vector<8x96xf32>
    %281 = arith.divf %279, %280 : vector<8x96xf32>
    %282 = vector.extract_strided_slice %267 {offsets = [0, 96], sizes = [8, 32], strides = [1, 1]} : vector<8x128xf32> to vector<8x32xf32>
    %283 = math.tanh %282 : vector<8x32xf32>
    %284 = vector.extract_strided_slice %273 {offsets = [0, 32], sizes = [8, 32], strides = [1, 1]} : vector<8x96xf32> to vector<8x32xf32>
    %285 = arith.mulf %284, %239 : vector<8x32xf32>
    %286 = vector.extract_strided_slice %273 {offsets = [0, 0], sizes = [8, 32], strides = [1, 1]} : vector<8x96xf32> to vector<8x32xf32>
    %287 = arith.mulf %286, %275 : vector<8x32xf32>
    %288 = arith.addf %285, %287 : vector<8x32xf32>
    %289 = vector.extract_strided_slice %273 {offsets = [0, 64], sizes = [8, 32], strides = [1, 1]} : vector<8x96xf32> to vector<8x32xf32>
    %290 = math.tanh %288 : vector<8x32xf32>
    %291 = arith.mulf %289, %290 : vector<8x32xf32>
    %292 = vector.extract_strided_slice %281 {offsets = [0, 32], sizes = [8, 32], strides = [1, 1]} : vector<8x96xf32> to vector<8x32xf32>
    %293 = arith.mulf %292, %247 : vector<8x32xf32>
    %294 = vector.extract_strided_slice %281 {offsets = [0, 0], sizes = [8, 32], strides = [1, 1]} : vector<8x96xf32> to vector<8x32xf32>
    %295 = arith.mulf %294, %283 : vector<8x32xf32>
    %296 = arith.addf %293, %295 : vector<8x32xf32>
    %297 = vector.extract_strided_slice %281 {offsets = [0, 64], sizes = [8, 32], strides = [1, 1]} : vector<8x96xf32> to vector<8x32xf32>
    %298 = math.tanh %296 : vector<8x32xf32>
    %299 = arith.mulf %297, %298 : vector<8x32xf32>
    %300 = arith.index_cast %257 : i32 to index
    %c0_72 = arith.constant 0 : index
    %301 = vector.load %arg9[%300, %c0_72] : memref<64x64xf32, #tpu.memory_space<vmem>>, vector<8x32xf32>
    tpu.vector_store %arg9[%300, %c0_72], %291 {strides = array<i32>} : memref<64x64xf32, #tpu.memory_space<vmem>>, vector<8x32xf32>,
    %302 = arith.index_cast %259 : i32 to index
    %c32_73 = arith.constant 32 : index
    %303 = vector.load %arg9[%302, %c32_73] : memref<64x64xf32, #tpu.memory_space<vmem>>, vector<8x32xf32>
    tpu.vector_store %arg9[%302, %c32_73], %299 {strides = array<i32>} : memref<64x64xf32, #tpu.memory_space<vmem>>, vector<8x32xf32>,
    %c6_i32 = arith.constant 6 : i32
    %c7_i32_74 = arith.constant 7 : i32
    %304 = arith.subi %c7_i32_74, %c6_i32 : i32
    %c8_i32_75 = arith.constant 8 : i32
    %305 = arith.muli %c6_i32, %c8_i32_75 : i32
    %306 = tpu.assume_multiple %305, 8 : i32
    %c8_i32_76 = arith.constant 8 : i32
    %307 = arith.muli %304, %c8_i32_76 : i32
    %308 = tpu.assume_multiple %307, 8 : i32
    %cst_77 = arith.constant dense<0.000000e+00> : vector<8x128xf32>
    %309 = tpu.matmul %291, %7, %cst_77 {dimension_numbers = #tpu.dot_dimension_numbers<[1], [0], [0], [1], [0, 0, 1, 1], [], []>} : vector<8x32xf32>, vector<32x128xf32>, vector<8x128xf32> -> vector<8x128xf32>
    %cst_78 = arith.constant dense<0.000000e+00> : vector<8x128xf32>
    %310 = tpu.matmul %299, %8, %cst_78 {dimension_numbers = #tpu.dot_dimension_numbers<[1], [0], [0], [1], [0, 0, 1, 1], [], []>} : vector<8x32xf32>, vector<32x128xf32>, vector<8x128xf32> -> vector<8x128xf32>
    %311 = arith.index_cast %306 : i32 to index
    %c0_79 = arith.constant 0 : index
    %312 = vector.load %arg8[%311, %c0_79] : memref<64x256xf32, #tpu.memory_space<vmem>>, vector<8x128xf32>
    %313 = arith.addf %309, %312 : vector<8x128xf32>
    %314 = arith.index_cast %308 : i32 to index
    %c128_80 = arith.constant 128 : index
    %315 = vector.load %arg8[%314, %c128_80] : memref<64x256xf32, #tpu.memory_space<vmem>>, vector<8x128xf32>
    %316 = arith.addf %310, %315 : vector<8x128xf32>
    %317 = vector.extract_strided_slice %313 {offsets = [0, 0], sizes = [8, 96], strides = [1, 1]} : vector<8x128xf32> to vector<8x96xf32>
    %318 = arith.negf %317 : vector<8x96xf32>
    %319 = math.exp %318 : vector<8x96xf32>
    %cst_81 = arith.constant 1.000000e+00 : f32
    %320 = vector.broadcast %cst_81 : f32 to vector<8x96xf32>
    %321 = arith.addf %320, %319 : vector<8x96xf32>
    %322 = arith.divf %320, %321 : vector<8x96xf32>
    %323 = vector.extract_strided_slice %313 {offsets = [0, 96], sizes = [8, 32], strides = [1, 1]} : vector<8x128xf32> to vector<8x32xf32>
    %324 = math.tanh %323 : vector<8x32xf32>
    %325 = vector.extract_strided_slice %316 {offsets = [0, 0], sizes = [8, 96], strides = [1, 1]} : vector<8x128xf32> to vector<8x96xf32>
    %326 = arith.negf %325 : vector<8x96xf32>
    %327 = math.exp %326 : vector<8x96xf32>
    %cst_82 = arith.constant 1.000000e+00 : f32
    %328 = vector.broadcast %cst_82 : f32 to vector<8x96xf32>
    %329 = arith.addf %328, %327 : vector<8x96xf32>
    %330 = arith.divf %328, %329 : vector<8x96xf32>
    %331 = vector.extract_strided_slice %316 {offsets = [0, 96], sizes = [8, 32], strides = [1, 1]} : vector<8x128xf32> to vector<8x32xf32>
    %332 = math.tanh %331 : vector<8x32xf32>
    %333 = vector.extract_strided_slice %322 {offsets = [0, 32], sizes = [8, 32], strides = [1, 1]} : vector<8x96xf32> to vector<8x32xf32>
    %334 = arith.mulf %333, %288 : vector<8x32xf32>
    %335 = vector.extract_strided_slice %322 {offsets = [0, 0], sizes = [8, 32], strides = [1, 1]} : vector<8x96xf32> to vector<8x32xf32>
    %336 = arith.mulf %335, %324 : vector<8x32xf32>
    %337 = arith.addf %334, %336 : vector<8x32xf32>
    %338 = vector.extract_strided_slice %322 {offsets = [0, 64], sizes = [8, 32], strides = [1, 1]} : vector<8x96xf32> to vector<8x32xf32>
    %339 = math.tanh %337 : vector<8x32xf32>
    %340 = arith.mulf %338, %339 : vector<8x32xf32>
    %341 = vector.extract_strided_slice %330 {offsets = [0, 32], sizes = [8, 32], strides = [1, 1]} : vector<8x96xf32> to vector<8x32xf32>
    %342 = arith.mulf %341, %296 : vector<8x32xf32>
    %343 = vector.extract_strided_slice %330 {offsets = [0, 0], sizes = [8, 32], strides = [1, 1]} : vector<8x96xf32> to vector<8x32xf32>
    %344 = arith.mulf %343, %332 : vector<8x32xf32>
    %345 = arith.addf %342, %344 : vector<8x32xf32>
    %346 = vector.extract_strided_slice %330 {offsets = [0, 64], sizes = [8, 32], strides = [1, 1]} : vector<8x96xf32> to vector<8x32xf32>
    %347 = math.tanh %345 : vector<8x32xf32>
    %348 = arith.mulf %346, %347 : vector<8x32xf32>
    %349 = arith.index_cast %306 : i32 to index
    %c0_83 = arith.constant 0 : index
    %350 = vector.load %arg9[%349, %c0_83] : memref<64x64xf32, #tpu.memory_space<vmem>>, vector<8x32xf32>
    tpu.vector_store %arg9[%349, %c0_83], %340 {strides = array<i32>} : memref<64x64xf32, #tpu.memory_space<vmem>>, vector<8x32xf32>,
    %351 = arith.index_cast %308 : i32 to index
    %c32_84 = arith.constant 32 : index
    %352 = vector.load %arg9[%351, %c32_84] : memref<64x64xf32, #tpu.memory_space<vmem>>, vector<8x32xf32>
    tpu.vector_store %arg9[%351, %c32_84], %348 {strides = array<i32>} : memref<64x64xf32, #tpu.memory_space<vmem>>, vector<8x32xf32>,
    %c7_i32_85 = arith.constant 7 : i32
    %c7_i32_86 = arith.constant 7 : i32
    %353 = arith.subi %c7_i32_86, %c7_i32_85 : i32
    %c8_i32_87 = arith.constant 8 : i32
    %354 = arith.muli %c7_i32_85, %c8_i32_87 : i32
    %355 = tpu.assume_multiple %354, 8 : i32
    %c8_i32_88 = arith.constant 8 : i32
    %356 = arith.muli %353, %c8_i32_88 : i32
    %357 = tpu.assume_multiple %356, 8 : i32
    %cst_89 = arith.constant dense<0.000000e+00> : vector<8x128xf32>
    %358 = tpu.matmul %340, %7, %cst_89 {dimension_numbers = #tpu.dot_dimension_numbers<[1], [0], [0], [1], [0, 0, 1, 1], [], []>} : vector<8x32xf32>, vector<32x128xf32>, vector<8x128xf32> -> vector<8x128xf32>
    %cst_90 = arith.constant dense<0.000000e+00> : vector<8x128xf32>
    %359 = tpu.matmul %348, %8, %cst_90 {dimension_numbers = #tpu.dot_dimension_numbers<[1], [0], [0], [1], [0, 0, 1, 1], [], []>} : vector<8x32xf32>, vector<32x128xf32>, vector<8x128xf32> -> vector<8x128xf32>
    %360 = arith.index_cast %355 : i32 to index
    %c0_91 = arith.constant 0 : index
    %361 = vector.load %arg8[%360, %c0_91] : memref<64x256xf32, #tpu.memory_space<vmem>>, vector<8x128xf32>
    %362 = arith.addf %358, %361 : vector<8x128xf32>
    %363 = arith.index_cast %357 : i32 to index
    %c128_92 = arith.constant 128 : index
    %364 = vector.load %arg8[%363, %c128_92] : memref<64x256xf32, #tpu.memory_space<vmem>>, vector<8x128xf32>
    %365 = arith.addf %359, %364 : vector<8x128xf32>
    %366 = vector.extract_strided_slice %362 {offsets = [0, 0], sizes = [8, 96], strides = [1, 1]} : vector<8x128xf32> to vector<8x96xf32>
    %367 = arith.negf %366 : vector<8x96xf32>
    %368 = math.exp %367 : vector<8x96xf32>
    %cst_93 = arith.constant 1.000000e+00 : f32
    %369 = vector.broadcast %cst_93 : f32 to vector<8x96xf32>
    %370 = arith.addf %369, %368 : vector<8x96xf32>
    %371 = arith.divf %369, %370 : vector<8x96xf32>
    %372 = vector.extract_strided_slice %362 {offsets = [0, 96], sizes = [8, 32], strides = [1, 1]} : vector<8x128xf32> to vector<8x32xf32>
    %373 = math.tanh %372 : vector<8x32xf32>
    %374 = vector.extract_strided_slice %365 {offsets = [0, 0], sizes = [8, 96], strides = [1, 1]} : vector<8x128xf32> to vector<8x96xf32>
    %375 = arith.negf %374 : vector<8x96xf32>
    %376 = math.exp %375 : vector<8x96xf32>
    %cst_94 = arith.constant 1.000000e+00 : f32
    %377 = vector.broadcast %cst_94 : f32 to vector<8x96xf32>
    %378 = arith.addf %377, %376 : vector<8x96xf32>
    %379 = arith.divf %377, %378 : vector<8x96xf32>
    %380 = vector.extract_strided_slice %365 {offsets = [0, 96], sizes = [8, 32], strides = [1, 1]} : vector<8x128xf32> to vector<8x32xf32>
    %381 = math.tanh %380 : vector<8x32xf32>
    %382 = vector.extract_strided_slice %371 {offsets = [0, 32], sizes = [8, 32], strides = [1, 1]} : vector<8x96xf32> to vector<8x32xf32>
    %383 = arith.mulf %382, %337 : vector<8x32xf32>
    %384 = vector.extract_strided_slice %371 {offsets = [0, 0], sizes = [8, 32], strides = [1, 1]} : vector<8x96xf32> to vector<8x32xf32>
    %385 = arith.mulf %384, %373 : vector<8x32xf32>
    %386 = arith.addf %383, %385 : vector<8x32xf32>
    %387 = vector.extract_strided_slice %371 {offsets = [0, 64], sizes = [8, 32], strides = [1, 1]} : vector<8x96xf32> to vector<8x32xf32>
    %388 = math.tanh %386 : vector<8x32xf32>
    %389 = arith.mulf %387, %388 : vector<8x32xf32>
    %390 = vector.extract_strided_slice %379 {offsets = [0, 32], sizes = [8, 32], strides = [1, 1]} : vector<8x96xf32> to vector<8x32xf32>
    %391 = arith.mulf %390, %345 : vector<8x32xf32>
    %392 = vector.extract_strided_slice %379 {offsets = [0, 0], sizes = [8, 32], strides = [1, 1]} : vector<8x96xf32> to vector<8x32xf32>
    %393 = arith.mulf %392, %381 : vector<8x32xf32>
    %394 = arith.addf %391, %393 : vector<8x32xf32>
    %395 = vector.extract_strided_slice %379 {offsets = [0, 64], sizes = [8, 32], strides = [1, 1]} : vector<8x96xf32> to vector<8x32xf32>
    %396 = math.tanh %394 : vector<8x32xf32>
    %397 = arith.mulf %395, %396 : vector<8x32xf32>
    %398 = arith.index_cast %355 : i32 to index
    %c0_95 = arith.constant 0 : index
    %399 = vector.load %arg9[%398, %c0_95] : memref<64x64xf32, #tpu.memory_space<vmem>>, vector<8x32xf32>
    tpu.vector_store %arg9[%398, %c0_95], %389 {strides = array<i32>} : memref<64x64xf32, #tpu.memory_space<vmem>>, vector<8x32xf32>,
    %400 = arith.index_cast %357 : i32 to index
    %c32_96 = arith.constant 32 : index
    %401 = vector.load %arg9[%400, %c32_96] : memref<64x64xf32, #tpu.memory_space<vmem>>, vector<8x32xf32>
    tpu.vector_store %arg9[%400, %c32_96], %397 {strides = array<i32>} : memref<64x64xf32, #tpu.memory_space<vmem>>, vector<8x32xf32>,
    %c8_i32_97 = arith.constant 8 : i32
    %c0_98 = arith.constant 0 : index
    %c0_99 = arith.constant 0 : index
    %402 = vector.load %arg9[%c0_98, %c0_99] : memref<64x64xf32, #tpu.memory_space<vmem>>, vector<64x64xf32>
    %403 = arith.truncf %402 : vector<64x64xf32> to vector<64x64xbf16>
    %c0_100 = arith.constant 0 : index
    %c0_101 = arith.constant 0 : index
    %404 = vector.load %arg5[%c0_100, %c0_101] : memref<64x128xbf16, #tpu.memory_space<vmem>>, vector<64x128xbf16>
    %cst_102 = arith.constant dense<0.000000e+00> : vector<64x128xf32>
    %405 = tpu.matmul %403, %404, %cst_102 {dimension_numbers = #tpu.dot_dimension_numbers<[1], [0], [0], [1], [0, 0, 1, 1], [], []>} : vector<64x64xbf16>, vector<64x128xbf16>, vector<64x128xf32> -> vector<64x128xf32>
    %c0_103 = arith.constant 0 : index
    %c0_104 = arith.constant 0 : index
    %406 = vector.load %arg6[%c0_103, %c0_104] : memref<1x128xf32, #tpu.memory_space<vmem>>, vector<1x128xf32>
    %407 = vector.broadcast %406 : vector<1x128xf32> to vector<64x128xf32>
    %408 = arith.addf %405, %407 : vector<64x128xf32>
    %c0_105 = arith.constant 0 : index
    %c0_106 = arith.constant 0 : index
    %409 = vector.load %arg7[%c0_105, %c0_106] : memref<64x128xf32, #tpu.memory_space<vmem>>, vector<64x128xf32>
    tpu.vector_store %arg7[%c0_105, %c0_106], %408 {strides = array<i32>} : memref<64x128xf32, #tpu.memory_space<vmem>>, vector<64x128xf32>,
    return
  }
}

</mosaic_0001>

<llo_original>
// kernel: tpu_custom_call.1
$region0: #{tpu_custom_call.1}
  #allocation0 [shape = 'u32[]', space=smem, size = 0x4, offset = 0x4, fixed_abs, tag = 'smem constant byte address 0x4 - core index']
  #allocation1 [shape = 'u32[144,128]{1,0:T(1,128)}', space=vmem, size = 0x12000, scoped, tag = 'internal scratch']
  #allocation2 [shape = 'f32[64,256]{1,0:T(8,128)}', space=vmem, size = 0x10000, scoped, tag = 'scratch operand']
  #allocation3 [shape = 'f32[64,64]{1,0:T(8,128)}', space=vmem, size = 0x8000, scoped, tag = 'scratch operand']
  %s0 = inlined_call_operand.hbm [shape: bf16[64,16], index: 0, kind: input, shape index: {}]
  %s1 = inlined_call_operand.hbm [shape: bf16[16,256], index: 1, kind: input, shape index: {}]
  %s2 = inlined_call_operand.hbm [shape: f32[1,256], index: 2, kind: input, shape index: {}]
  %s3 = inlined_call_operand.hbm [shape: f32[32,128], index: 3, kind: input, shape index: {}]
  %s4 = inlined_call_operand.hbm [shape: f32[32,128], index: 4, kind: input, shape index: {}]
  %s5 = inlined_call_operand.hbm [shape: bf16[64,128], index: 5, kind: input, shape index: {}]
  %s6 = inlined_call_operand.hbm [shape: f32[1,128], index: 6, kind: input, shape index: {}]
  %s7 = inlined_call_operand.hbm [shape: f32[64,128], index: 7, kind: output, shape index: {}]
  %s8 = sld [smem:[#allocation0]]
  $region66: #{tpu_custom_call.1} parent=0
    _
  %s10 = ssub.s32 1, %s8
  %s11 = scalar_select 0, %s10, %s8
  $region1: #{tpu_custom_call.1} parent=0
    #allocation4 [shape = 'u8[16384]{0}', space=vmem, size = 0x4000, scoped, tag = 'input window, operand 0, single buffered']
    #allocation5 [shape = 's32[1]{0}', space=sflag, size = 0x4, scoped, tag = 'scoped memory for tpu_custom_call.1']
    #allocation6 [shape = 's32[1]{0}', space=sflag, size = 0x4, scoped, tag = 'scoped memory for tpu_custom_call.1']
    #allocation7 [shape = 'u8[8192]{0}', space=vmem, size = 0x2000, scoped, tag = 'input window, operand 1, single buffered']
    #allocation8 [shape = 's32[1]{0}', space=sflag, size = 0x4, scoped, tag = 'scoped memory for tpu_custom_call.1']
    #allocation9 [shape = 'u8[1024]{0}', space=vmem, size = 0x400, scoped, tag = 'input window, operand 2, single buffered']
    #allocation10 [shape = 'u8[16384]{0}', space=vmem, size = 0x4000, scoped, tag = 'input window, operand 3, single buffered']
    #allocation11 [shape = 's32[1]{0}', space=sflag, size = 0x4, scoped, tag = 'scoped memory for tpu_custom_call.1']
    #allocation12 [shape = 'u8[16384]{0}', space=vmem, size = 0x4000, scoped, tag = 'input window, operand 4, single buffered']
    #allocation13 [shape = 'u8[16384]{0}', space=vmem, size = 0x4000, scoped, tag = 'input window, operand 5, single buffered']
    #allocation14 [shape = 's32[1]{0}', space=sflag, size = 0x4, scoped, tag = 'scoped memory for tpu_custom_call.1']
    #allocation15 [shape = 'u8[512]{0}', space=vmem, size = 0x400, scoped, tag = 'input window, operand 6, single buffered']
    #allocation16 [shape = 'u8[32768]{0}', space=vmem, size = 0x8000, scoped, tag = 'output window, operand 0, single buffered']
    %12 = vsyncpa [#allocation5], 0
    %13 = vsyncpa [#allocation8], 0
    %14 = vsyncpa [#allocation11], 0
    %15 = vsyncpa [#allocation14], 0
    %16 = vsyncpa [#allocation6], 0
    // Predicated region
    $region2: #{tpu_custom_call.1} parent=1 // pred_check
      _
    $region3: #{tpu_custom_call.1} parent=1 // pred_check_branch
      %18 = sbr.rel (0) target = $region5
    $region4: #{tpu_custom_call.1} parent=1 // pred_region
      %s20 = ssub.s32 512, 512
      %21 = vsyncadd [#allocation5], %s20
      %s22 = sshll.u32 [#allocation4], 4
      %s23 = int_to_ptr.vmem [resolvable:$true] %s22
      %28 = dma.hbm_to_vmem [thread:$0]  %s0, 512, %s23, [#allocation5], 64, 64, 4
    $region5: #{tpu_custom_call.1} parent=1 // pred_fallthru
      _
    // Predicated region
    $region6: #{tpu_custom_call.1} parent=1 // pred_check
      _
    $region7: #{tpu_custom_call.1} parent=1 // pred_check_branch
      %30 = sbr.rel (0) target = $region9
    $region8: #{tpu_custom_call.1} parent=1 // pred_region
      %s32 = ssub.s32 256, 256
      %33 = vsyncadd [#allocation8], %s32
      %s34 = sshll.u32 [#allocation7], 4
      %s35 = int_to_ptr.vmem [resolvable:$true] %s34
      %40 = dma.hbm_to_vmem [thread:$0]  %s1, 256, %s35, [#allocation8], 128, 128, 8
    $region9: #{tpu_custom_call.1} parent=1 // pred_fallthru
      _
    // Predicated region
    $region10: #{tpu_custom_call.1} parent=1 // pred_check
      _
    $region11: #{tpu_custom_call.1} parent=1 // pred_check_branch
      %42 = sbr.rel (0) target = $region13
    $region12: #{tpu_custom_call.1} parent=1 // pred_region
      %s44 = ssub.s32 32, 32
      %45 = vsyncadd [#allocation8], %s44
      %s47 = sshll.u32 [#allocation9], 4
      %s48 = int_to_ptr.vmem [resolvable:$true] %s47
      %50 = dma.hbm_to_vmem [thread:$0]  %s2, 32, %s48, [#allocation8]
    $region13: #{tpu_custom_call.1} parent=1 // pred_fallthru
      _
    // Predicated region
    $region14: #{tpu_custom_call.1} parent=1 // pred_check
      _
    $region15: #{tpu_custom_call.1} parent=1 // pred_check_branch
      %52 = sbr.rel (0) target = $region17
    $region16: #{tpu_custom_call.1} parent=1 // pred_region
      %s54 = ssub.s32 512, 512
      %55 = vsyncadd [#allocation11], %s54
      %s56 = sshll.u32 [#allocation10], 4
      %s57 = int_to_ptr.vmem [resolvable:$true] %s56
      %62 = dma.hbm_to_vmem [thread:$0]  %s3, 512, %s57, [#allocation11], 128, 128, 8
    $region17: #{tpu_custom_call.1} parent=1 // pred_fallthru
      _
    // Predicated region
    $region18: #{tpu_custom_call.1} parent=1 // pred_check
      _
    $region19: #{tpu_custom_call.1} parent=1 // pred_check_branch
      %64 = sbr.rel (0) target = $region21
    $region20: #{tpu_custom_call.1} parent=1 // pred_region
      %s66 = ssub.s32 512, 512
      %67 = vsyncadd [#allocation11], %s66
      %s68 = sshll.u32 [#allocation12], 4
      %s69 = int_to_ptr.vmem [resolvable:$true] %s68
      %74 = dma.hbm_to_vmem [thread:$0]  %s4, 512, %s69, [#allocation11], 128, 128, 8
    $region21: #{tpu_custom_call.1} parent=1 // pred_fallthru
      _
    // Predicated region
    $region22: #{tpu_custom_call.1} parent=1 // pred_check
      _
    $region23: #{tpu_custom_call.1} parent=1 // pred_check_branch
      %76 = sbr.rel (0) target = $region25
    $region24: #{tpu_custom_call.1} parent=1 // pred_region
      %s78 = ssub.s32 512, 512
      %79 = vsyncadd [#allocation14], %s78
      %s80 = sshll.u32 [#allocation13], 4
      %s81 = int_to_ptr.vmem [resolvable:$true] %s80
      %86 = dma.hbm_to_vmem [thread:$0]  %s5, 512, %s81, [#allocation14], 64, 64, 4
    $region25: #{tpu_custom_call.1} parent=1 // pred_fallthru
      _
    // Predicated region
    $region26: #{tpu_custom_call.1} parent=1 // pred_check
      _
    $region27: #{tpu_custom_call.1} parent=1 // pred_check_branch
      %88 = sbr.rel (0) target = $region29
    $region28: #{tpu_custom_call.1} parent=1 // pred_region
      %s90 = ssub.s32 16, 16
      %91 = vsyncadd [#allocation14], %s90
      %s93 = sshll.u32 [#allocation15], 4
      %s94 = int_to_ptr.vmem [resolvable:$true] %s93
      %96 = dma.hbm_to_vmem [thread:$0]  %s6, 16, %s94, [#allocation14]
    $region29: #{tpu_custom_call.1} parent=1 // pred_fallthru
      _
    // Predicated region
    $region30: #{tpu_custom_call.1} parent=1 // pred_check
      _
    $region31: #{tpu_custom_call.1} parent=1 // pred_check_branch
      %98 = sbr.rel (0) target = $region33
    $region32: #{tpu_custom_call.1} parent=1 // pred_region
      %99 = dma.done [#allocation5], 512
    $region33: #{tpu_custom_call.1} parent=1 // pred_fallthru
      _
    // Predicated region
    $region34: #{tpu_custom_call.1} parent=1 // pred_check
      _
    $region35: #{tpu_custom_call.1} parent=1 // pred_check_branch
      %101 = sbr.rel (0) target = $region37
    $region36: #{tpu_custom_call.1} parent=1 // pred_region
      %102 = dma.done [#allocation8], 256
    $region37: #{tpu_custom_call.1} parent=1 // pred_fallthru
      _
    // Predicated region
    $region38: #{tpu_custom_call.1} parent=1 // pred_check
      _
    $region39: #{tpu_custom_call.1} parent=1 // pred_check_branch
      %104 = sbr.rel (0) target = $region41
    $region40: #{tpu_custom_call.1} parent=1 // pred_region
      %105 = dma.done [#allocation8], 32
    $region41: #{tpu_custom_call.1} parent=1 // pred_fallthru
      _
    // Predicated region
    $region42: #{tpu_custom_call.1} parent=1 // pred_check
      _
    $region43: #{tpu_custom_call.1} parent=1 // pred_check_branch
      %107 = sbr.rel (0) target = $region45
    $region44: #{tpu_custom_call.1} parent=1 // pred_region
      %108 = dma.done [#allocation11], 512
    $region45: #{tpu_custom_call.1} parent=1 // pred_fallthru
      _
    // Predicated region
    $region46: #{tpu_custom_call.1} parent=1 // pred_check
      _
    $region47: #{tpu_custom_call.1} parent=1 // pred_check_branch
      %110 = sbr.rel (0) target = $region49
    $region48: #{tpu_custom_call.1} parent=1 // pred_region
      %111 = dma.done [#allocation11], 512
    $region49: #{tpu_custom_call.1} parent=1 // pred_fallthru
      _
    // Predicated region
    $region50: #{tpu_custom_call.1} parent=1 // pred_check
      _
    $region51: #{tpu_custom_call.1} parent=1 // pred_check_branch
      %113 = sbr.rel (0) target = $region53
    $region52: #{tpu_custom_call.1} parent=1 // pred_region
      %114 = dma.done [#allocation14], 512
    $region53: #{tpu_custom_call.1} parent=1 // pred_fallthru
      _
    // Predicated region
    $region54: #{tpu_custom_call.1} parent=1 // pred_check
      _
    $region55: #{tpu_custom_call.1} parent=1 // pred_check_branch
      %116 = sbr.rel (0) target = $region57
    $region56: #{tpu_custom_call.1} parent=1 // pred_region
      %117 = dma.done [#allocation14], 16
    $region57: #{tpu_custom_call.1} parent=1 // pred_fallthru
      _
    %v119 = vld [vmem:[#allocation4] sm:$0xf]
    %v120 = vld [vmem:[#allocation4 + $0x4] sm:$0xf]
    %v121 = vld [vmem:[#allocation4 + $0x8] sm:$0xf]
    %v122 = vld [vmem:[#allocation4 + $0xc] sm:$0xf]
    %v123 = vld [vmem:[#allocation4 + $0x10] sm:$0xf]
    %v124 = vld [vmem:[#allocation4 + $0x14] sm:$0xf]
    %v125 = vld [vmem:[#allocation4 + $0x18] sm:$0xf]
    %v126 = vld [vmem:[#allocation4 + $0x1c] sm:$0xf]
    %v127 = vld [vmem:[#allocation7] sm:$0xff]
    %v128 = vld [vmem:[#allocation7 + $0x8] sm:$0xff]
    %v129 = vld [vmem:[#allocation9] sm:$0x3]
    %v131 = vlaneseq
    %v132 = vshrl.u32 %v131, 7
    %v133 = vsub.s32 0, %v132
    %v134 = vrot.slane %v129, %v133
    %v135 = vlaneseq
    %v136 = vshrl.u32 %v135, 7
    %v137 = vsub.s32 1, %v136
    %v138 = vrot.slane %v129, %v137
    %v149 = vunpack.c.l.b16 %v119
    %v150 = vunpack.c.l.b16 %v120
    %v151 = vunpack.c.l.b16 %v121
    %v152 = vunpack.c.l.b16 %v122
    %v153 = vunpack.c.l.b16 %v123
    %v154 = vunpack.c.l.b16 %v124
    %v155 = vunpack.c.l.b16 %v125
    %v156 = vunpack.c.l.b16 %v126
    %v157 = vpack.c.b16 %v150, %v149
    %v158 = vpack.c.b16 %v152, %v151
    %v159 = vpack.c.b16 %v154, %v153
    %v160 = vpack.c.b16 %v156, %v155
    %v163 = vunpack.c.l.b16 %v127
    %v164 = vunpack.c.h.b16 %v127
    %v165 = vunpack.c.l.b16 %v128
    %v166 = vunpack.c.h.b16 %v128
    %v167 = vpack.c.b16 %v165, %v163
    %v168 = vpack.c.b16 %v166, %v164
    %vm171 = vcmask 130048
    %v173 = vsel %vm171, %v157, 0
    %v176 = vsel %vm171, %v158, 0
    %v179 = vsel %vm171, %v159, 0
    %v182 = vsel %vm171, %v160, 0
    %184 = vmatprep.subr.bf16.mxu0 %v168
    %185 = vmatpush1.bf16.msra.mxu0 %v167
    %186 = vmatprep.subr.bf16.mxu0 0
    %187 = vmatpush1.bf16.msra.mxu0 0
    %188 = vmatprep.subr.bf16.mxu0 0
    %189 = vmatpush1.bf16.msra.mxu0 0
    %190 = vmatprep.subr.bf16.mxu0 0
    %191 = vmatpush1.bf16.msra.mxu0 0
    %192 = vmatprep.subr.bf16.mxu0 0
    %193 = vmatpush1.bf16.msra.mxu0 0
    %194 = vmatprep.subr.bf16.mxu0 0
    %195 = vmatpush1.bf16.msra.mxu0 0
    %196 = vmatprep.subr.bf16.mxu0 0
    %197 = vmatpush1.bf16.msra.mxu0 0
    %198 = vmatprep.subr.bf16.mxu0 0
    %199 = vmatpush1.bf16.msra.mxu0 0
    %200 = vmatprep.subr.bf16.mxu0 0
    %201 = vmatpush1.bf16.msra.mxu0 0
    %202 = vmatprep.subr.bf16.mxu0 0
    %203 = vmatpush1.bf16.msra.mxu0 0
    %204 = vmatprep.subr.bf16.mxu0 0
    %205 = vmatpush1.bf16.msra.mxu0 0
    %206 = vmatprep.subr.bf16.mxu0 0
    %207 = vmatpush1.bf16.msra.mxu0 0
    %208 = vmatprep.subr.bf16.mxu0 0
    %209 = vmatpush1.bf16.msra.mxu0 0
    %210 = vmatprep.subr.bf16.mxu0 0
    %211 = vmatpush1.bf16.msra.mxu0 0
    %212 = vmatprep.subr.bf16.mxu0 0
    %213 = vmatpush1.bf16.msra.mxu0 0
    %214 = vmatprep.subr.bf16.mxu0 0
    %215 = vmatpush1.bf16.msra.mxu0 0
    %216 = vmatprep.mubr.bf16.mxu0 0
    %217 = vmatmul.mubr.bf16.gmra.mrb[0].mxu0 %v173
    %v218 = vpop.f32.mrb[0].mxu0
    %v219 = vadd.f32 %v134, %v218
    %v220 = vpop.f32.mrb[0].mxu0
    %v221 = vadd.f32 %v138, %v220
    %v222 = vpop.f32.mrb[0].mxu0
    %v223 = vadd.f32 %v134, %v222
    %v224 = vpop.f32.mrb[0].mxu0
    %v225 = vadd.f32 %v138, %v224
    %226 = vmatprep.mubr.bf16.mxu0 0
    %227 = vmatmul.mubr.bf16.gmra.mrb[0].mxu0 %v176
    %v228 = vpop.f32.mrb[0].mxu0
    %v229 = vadd.f32 %v134, %v228
    %v230 = vpop.f32.mrb[0].mxu0
    %v231 = vadd.f32 %v138, %v230
    %v232 = vpop.f32.mrb[0].mxu0
    %v233 = vadd.f32 %v134, %v232
    %v234 = vpop.f32.mrb[0].mxu0
    %v235 = vadd.f32 %v138, %v234
    %236 = vmatprep.mubr.bf16.mxu0 0
    %237 = vmatmul.mubr.bf16.gmra.mrb[0].mxu0 %v179
    %v238 = vpop.f32.mrb[0].mxu0
    %v239 = vadd.f32 %v134, %v238
    %v240 = vpop.f32.mrb[0].mxu0
    %v241 = vadd.f32 %v138, %v240
    %v242 = vpop.f32.mrb[0].mxu0
    %v243 = vadd.f32 %v134, %v242
    %v244 = vpop.f32.mrb[0].mxu0
    %v245 = vadd.f32 %v138, %v244
    %246 = vmatprep.mubr.bf16.mxu0 0
    %247 = vmatmul.mubr.bf16.gmra.mrb[0].mxu0 %v182
    %v248 = vpop.f32.mrb[0].mxu0
    %v249 = vadd.f32 %v134, %v248
    %v250 = vpop.f32.mrb[0].mxu0
    %v251 = vadd.f32 %v138, %v250
    %v252 = vpop.f32.mrb[0].mxu0
    %v253 = vadd.f32 %v134, %v252
    %v254 = vpop.f32.mrb[0].mxu0
    %v255 = vadd.f32 %v138, %v254
    %256 = vdwg.mxu0
    %257 = vst [vmem:[#allocation2] sm:$0xff] %v219
    %258 = vst [vmem:[#allocation2 + $0x8] sm:$0xff] %v221
    %259 = vst [vmem:[#allocation2 + $0x10] sm:$0xff] %v223
    %260 = vst [vmem:[#allocation2 + $0x18] sm:$0xff] %v225
    %261 = vst [vmem:[#allocation2 + $0x20] sm:$0xff] %v229
    %262 = vst [vmem:[#allocation2 + $0x28] sm:$0xff] %v231
    %263 = vst [vmem:[#allocation2 + $0x30] sm:$0xff] %v233
    %264 = vst [vmem:[#allocation2 + $0x38] sm:$0xff] %v235
    %265 = vst [vmem:[#allocation2 + $0x40] sm:$0xff] %v239
    %266 = vst [vmem:[#allocation2 + $0x48] sm:$0xff] %v241
    %267 = vst [vmem:[#allocation2 + $0x50] sm:$0xff] %v243
    %268 = vst [vmem:[#allocation2 + $0x58] sm:$0xff] %v245
    %269 = vst [vmem:[#allocation2 + $0x60] sm:$0xff] %v249
    %270 = vst [vmem:[#allocation2 + $0x68] sm:$0xff] %v251
    %271 = vst [vmem:[#allocation2 + $0x70] sm:$0xff] %v253
    %272 = vst [vmem:[#allocation2 + $0x78] sm:$0xff] %v255
    %v273 = vld [vmem:[#allocation10] sm:$0xff]
    %v274 = vld [vmem:[#allocation10 + $0x8] sm:$0xff]
    %v275 = vld [vmem:[#allocation10 + $0x10] sm:$0xff]
    %v276 = vld [vmem:[#allocation10 + $0x18] sm:$0xff]
    %v277 = vld [vmem:[#allocation12] sm:$0xff]
    %v278 = vld [vmem:[#allocation12 + $0x8] sm:$0xff]
    %v279 = vld [vmem:[#allocation12 + $0x10] sm:$0xff]
    %v280 = vld [vmem:[#allocation12 + $0x18] sm:$0xff]
    %s281 = smul.u32 0, 2
    %s282 = smul.addr %s281, 8
    %s283 = scalar_lea.vmem [#allocation2], %s282
    %v284 = vld [vmem:[%s283] sm:$0xff]
    %vm285 = vcmask 261120
    %v287 = vsel %vm285, 0.0, 0
    %289 = vmatprep.subr.mxu0 0.0
    %290 = vmatpush1.msra.mxu0 %v273
    %291 = vmatprep.subr.mxu0 0.0
    %292 = vmatpush1.msra.mxu0 %v274
    %293 = vmatprep.subr.mxu0 0.0
    %294 = vmatpush1.msra.mxu0 %v275
    %295 = vmatprep.subr.mxu0 0.0
    %296 = vmatpush1.msra.mxu0 %v276
    %297 = vmatprep.subr.mxu0 0.0
    %298 = vmatpush1.msra.mxu0 0.0
    %299 = vmatprep.subr.mxu0 0.0
    %300 = vmatpush1.msra.mxu0 0.0
    %301 = vmatprep.subr.mxu0 0.0
    %302 = vmatpush1.msra.mxu0 0.0
    %303 = vmatprep.subr.mxu0 0.0
    %304 = vmatpush1.msra.mxu0 0.0
    %305 = vmatprep.subr.mxu0 0.0
    %306 = vmatpush1.msra.mxu0 0.0
    %307 = vmatprep.subr.mxu0 0.0
    %308 = vmatpush1.msra.mxu0 0.0
    %309 = vmatprep.subr.mxu0 0.0
    %310 = vmatpush1.msra.mxu0 0.0
    %311 = vmatprep.subr.mxu0 0.0
    %312 = vmatpush1.msra.mxu0 0.0
    %313 = vmatprep.subr.mxu0 0.0
    %314 = vmatpush1.msra.mxu0 0.0
    %315 = vmatprep.subr.mxu0 0.0
    %316 = vmatpush1.msra.mxu0 0.0
    %317 = vmatprep.subr.mxu0 0.0
    %318 = vmatpush1.msra.mxu0 0.0
    %319 = vmatprep.subr.mxu0 0.0
    %320 = vmatpush1.msra.mxu0 0.0
    %321 = vmatprep.subr.mxu0 0.0
    %322 = vmatpush1.msra.mxu0 0.0
    %323 = vmatprep.subr.mxu0 0.0
    %324 = vmatpush1.msra.mxu0 0.0
    %325 = vmatprep.subr.mxu0 0.0
    %326 = vmatpush1.msra.mxu0 0.0
    %327 = vmatprep.subr.mxu0 0.0
    %328 = vmatpush1.msra.mxu0 0.0
    %329 = vmatprep.subr.mxu0 0.0
    %330 = vmatpush1.msra.mxu0 0.0
    %331 = vmatprep.subr.mxu0 0.0
    %332 = vmatpush1.msra.mxu0 0.0
    %333 = vmatprep.subr.mxu0 0.0
    %334 = vmatpush1.msra.mxu0 0.0
    %335 = vmatprep.subr.mxu0 0.0
    %336 = vmatpush1.msra.mxu0 0.0
    %337 = vmatprep.subr.mxu0 0.0
    %338 = vmatpush1.msra.mxu0 0.0
    %339 = vmatprep.subr.mxu0 0.0
    %340 = vmatpush1.msra.mxu0 0.0
    %341 = vmatprep.subr.mxu0 0.0
    %342 = vmatpush1.msra.mxu0 0.0
    %343 = vmatprep.subr.mxu0 0.0
    %344 = vmatpush1.msra.mxu0 0.0
    %345 = vmatprep.subr.mxu0 0.0
    %346 = vmatpush1.msra.mxu0 0.0
    %347 = vmatprep.subr.mxu0 0.0
    %348 = vmatpush1.msra.mxu0 0.0
    %349 = vmatprep.subr.mxu0 0.0
    %350 = vmatpush1.msra.mxu0 0.0
    %351 = vmatprep.subr.mxu0 0.0
    %352 = vmatpush1.msra.mxu0 0.0
    %353 = vmatprep.mubr.f32.mxu0 0.0
    %354 = vmatmul.mubr.f32.gmra.mrb[0].mxu0 %v287
    %v355 = vpop.f32.mrb[0].mxu0
    %v356 = vadd.f32 %v284, %v355
    %v357 = vpop.f32.mrb[0].mxu0
    %358 = vdwg.mxu0
    %s359 = smul.u32 7, 2
    %s360 = smul.addr %s359, 8
    %s361 = scalar_lea.vmem [#allocation2], %s360
    %v362 = vld [vmem:[%s361 + $0x8] sm:$0xff]
    %363 = vmatprep.subr.mxu0 0.0
    %364 = vmatpush1.msra.mxu0 %v277
    %365 = vmatprep.subr.mxu0 0.0
    %366 = vmatpush1.msra.mxu0 %v278
    %367 = vmatprep.subr.mxu0 0.0
    %368 = vmatpush1.msra.mxu0 %v279
    %369 = vmatprep.subr.mxu0 0.0
    %370 = vmatpush1.msra.mxu0 %v280
    %371 = vmatprep.subr.mxu0 0.0
    %372 = vmatpush1.msra.mxu0 0.0
    %373 = vmatprep.subr.mxu0 0.0
    %374 = vmatpush1.msra.mxu0 0.0
    %375 = vmatprep.subr.mxu0 0.0
    %376 = vmatpush1.msra.mxu0 0.0
    %377 = vmatprep.subr.mxu0 0.0
    %378 = vmatpush1.msra.mxu0 0.0
    %379 = vmatprep.subr.mxu0 0.0
    %380 = vmatpush1.msra.mxu0 0.0
    %381 = vmatprep.subr.mxu0 0.0
    %382 = vmatpush1.msra.mxu0 0.0
    %383 = vmatprep.subr.mxu0 0.0
    %384 = vmatpush1.msra.mxu0 0.0
    %385 = vmatprep.subr.mxu0 0.0
    %386 = vmatpush1.msra.mxu0 0.0
    %387 = vmatprep.subr.mxu0 0.0
    %388 = vmatpush1.msra.mxu0 0.0
    %389 = vmatprep.subr.mxu0 0.0
    %390 = vmatpush1.msra.mxu0 0.0
    %391 = vmatprep.subr.mxu0 0.0
    %392 = vmatpush1.msra.mxu0 0.0
    %393 = vmatprep.subr.mxu0 0.0
    %394 = vmatpush1.msra.mxu0 0.0
    %395 = vmatprep.subr.mxu0 0.0
    %396 = vmatpush1.msra.mxu0 0.0
    %397 = vmatprep.subr.mxu0 0.0
    %398 = vmatpush1.msra.mxu0 0.0
    %399 = vmatprep.subr.mxu0 0.0
    %400 = vmatpush1.msra.mxu0 0.0
    %401 = vmatprep.subr.mxu0 0.0
    %402 = vmatpush1.msra.mxu0 0.0
    %403 = vmatprep.subr.mxu0 0.0
    %404 = vmatpush1.msra.mxu0 0.0
    %405 = vmatprep.subr.mxu0 0.0
    %406 = vmatpush1.msra.mxu0 0.0
    %407 = vmatprep.subr.mxu0 0.0
    %408 = vmatpush1.msra.mxu0 0.0
    %409 = vmatprep.subr.mxu0 0.0
    %410 = vmatpush1.msra.mxu0 0.0
    %411 = vmatprep.subr.mxu0 0.0
    %412 = vmatpush1.msra.mxu0 0.0
    %413 = vmatprep.subr.mxu0 0.0
    %414 = vmatpush1.msra.mxu0 0.0
    %415 = vmatprep.subr.mxu0 0.0
    %416 = vmatpush1.msra.mxu0 0.0
    %417 = vmatprep.subr.mxu0 0.0
    %418 = vmatpush1.msra.mxu0 0.0
    %419 = vmatprep.subr.mxu0 0.0
    %420 = vmatpush1.msra.mxu0 0.0
    %421 = vmatprep.subr.mxu0 0.0
    %422 = vmatpush1.msra.mxu0 0.0
    %423 = vmatprep.subr.mxu0 0.0
    %424 = vmatpush1.msra.mxu0 0.0
    %425 = vmatprep.subr.mxu0 0.0
    %426 = vmatpush1.msra.mxu0 0.0
    %427 = vmatprep.mubr.f32.mxu0 0.0
    %428 = vmatmul.mubr.f32.gmra.mrb[0].mxu0 %v287
    %v429 = vpop.f32.mrb[0].mxu0
    %v430 = vadd.f32 %v362, %v429
    %v431 = vpop.f32.mrb[0].mxu0
    %432 = vdwg.mxu0
    %v433 = vxor.u32 %v356, 2147483648
    %v434 = vmul.f32 %v433, 1.442695
    %v435 = vpow.pop %v434
    %v436 = vadd.f32 %v435, 1.0
    %v437 = vrcp.pop %v436
    %v438 = vmul.f32 1.0, %v437
    %v439 = vtanh.pop %v356
    %v440 = vxor.u32 %v430, 2147483648
    %v441 = vmul.f32 %v440, 1.442695
    %v442 = vpow.pop %v441
    %v443 = vadd.f32 %v442, 1.0
    %v444 = vrcp.pop %v443
    %v445 = vmul.f32 1.0, %v444
    %v446 = vtanh.pop %v430
    %v447 = vmul.f32 %v438, 0.0
    %449 = vrot.lane.b32.xlu0 %v439, 32
    %v450 = vpop.permute.xlu0 %449
    %v452 = vmul.f32 %v438, %v450
    %454 = vrot.lane.b32.xlu0 %v452, 32
    %v455 = vpop.permute.xlu0 %454
    %v457 = vadd.f32 %v447, %v455
    %v458 = vtanh.pop %v457
    %460 = vrot.lane.b32.xlu0 %v458, 32
    %v461 = vpop.permute.xlu0 %460
    %v463 = vmul.f32 %v438, %v461
    %v464 = vmul.f32 %v445, 0.0
    %466 = vrot.lane.b32.xlu0 %v446, 32
    %v467 = vpop.permute.xlu0 %466
    %v469 = vmul.f32 %v445, %v467
    %471 = vrot.lane.b32.xlu0 %v469, 32
    %v472 = vpop.permute.xlu0 %471
    %v474 = vadd.f32 %v464, %v472
    %v475 = vtanh.pop %v474
    %477 = vrot.lane.b32.xlu0 %v475, 32
    %v478 = vpop.permute.xlu0 %477
    %v480 = vmul.f32 %v445, %v478
    %482 = vrot.lane.b32.xlu0 %v463, 64
    %v483 = vpop.permute.xlu0 %482
    %485 = vst.msk [vmem:[#allocation3] sm:$0xff] %vm285, %v483
    %487 = vrot.lane.b32.xlu0 %v480, 96
    %v488 = vpop.permute.xlu0 %487
    %s490 = scalar_lea.vmem [#allocation3], 56
    %vm491 = vcmask 523520
    %492 = vst.msk [vmem:[%s490] sm:$0xff] %vm491, %v488
    %s493 = smul.u32 1, 2
    %s494 = smul.addr %s493, 8
    %s495 = scalar_lea.vmem [#allocation2], %s494
    %v496 = vld [vmem:[%s495] sm:$0xff]
    %v497 = vsel %vm285, %v483, 0
    %499 = vmatprep.subr.mxu0 0.0
    %500 = vmatpush1.msra.mxu0 %v273
    %501 = vmatprep.subr.mxu0 0.0
    %502 = vmatpush1.msra.mxu0 %v274
    %503 = vmatprep.subr.mxu0 0.0
    %504 = vmatpush1.msra.mxu0 %v275
    %505 = vmatprep.subr.mxu0 0.0
    %506 = vmatpush1.msra.mxu0 %v276
    %507 = vmatprep.subr.mxu0 0.0
    %508 = vmatpush1.msra.mxu0 0.0
    %509 = vmatprep.subr.mxu0 0.0
    %510 = vmatpush1.msra.mxu0 0.0
    %511 = vmatprep.subr.mxu0 0.0
    %512 = vmatpush1.msra.mxu0 0.0
    %513 = vmatprep.subr.mxu0 0.0
    %514 = vmatpush1.msra.mxu0 0.0
    %515 = vmatprep.subr.mxu0 0.0
    %516 = vmatpush1.msra.mxu0 0.0
    %517 = vmatprep.subr.mxu0 0.0
    %518 = vmatpush1.msra.mxu0 0.0
    %519 = vmatprep.subr.mxu0 0.0
    %520 = vmatpush1.msra.mxu0 0.0
    %521 = vmatprep.subr.mxu0 0.0
    %522 = vmatpush1.msra.mxu0 0.0
    %523 = vmatprep.subr.mxu0 0.0
    %524 = vmatpush1.msra.mxu0 0.0
    %525 = vmatprep.subr.mxu0 0.0
    %526 = vmatpush1.msra.mxu0 0.0
    %527 = vmatprep.subr.mxu0 0.0
    %528 = vmatpush1.msra.mxu0 0.0
    %529 = vmatprep.subr.mxu0 0.0
    %530 = vmatpush1.msra.mxu0 0.0
    %531 = vmatprep.subr.mxu0 0.0
    %532 = vmatpush1.msra.mxu0 0.0
    %533 = vmatprep.subr.mxu0 0.0
    %534 = vmatpush1.msra.mxu0 0.0
    %535 = vmatprep.subr.mxu0 0.0
    %536 = vmatpush1.msra.mxu0 0.0
    %537 = vmatprep.subr.mxu0 0.0
    %538 = vmatpush1.msra.mxu0 0.0
    %539 = vmatprep.subr.mxu0 0.0
    %540 = vmatpush1.msra.mxu0 0.0
    %541 = vmatprep.subr.mxu0 0.0
    %542 = vmatpush1.msra.mxu0 0.0
    %543 = vmatprep.subr.mxu0 0.0
    %544 = vmatpush1.msra.mxu0 0.0
    %545 = vmatprep.subr.mxu0 0.0
    %546 = vmatpush1.msra.mxu0 0.0
    %547 = vmatprep.subr.mxu0 0.0
    %548 = vmatpush1.msra.mxu0 0.0
    %549 = vmatprep.subr.mxu0 0.0
    %550 = vmatpush1.msra.mxu0 0.0
    %551 = vmatprep.subr.mxu0 0.0
    %552 = vmatpush1.msra.mxu0 0.0
    %553 = vmatprep.subr.mxu0 0.0
    %554 = vmatpush1.msra.mxu0 0.0
    %555 = vmatprep.subr.mxu0 0.0
    %556 = vmatpush1.msra.mxu0 0.0
    %557 = vmatprep.subr.mxu0 0.0
    %558 = vmatpush1.msra.mxu0 0.0
    %559 = vmatprep.subr.mxu0 0.0
    %560 = vmatpush1.msra.mxu0 0.0
    %561 = vmatprep.subr.mxu0 0.0
    %562 = vmatpush1.msra.mxu0 0.0
    %563 = vmatprep.mubr.f32.mxu0 0.0
    %564 = vmatmul.mubr.f32.gmra.mrb[0].mxu0 %v497
    %v565 = vpop.f32.mrb[0].mxu0
    %v566 = vadd.f32 %v496, %v565
    %v567 = vpop.f32.mrb[0].mxu0
    %568 = vdwg.mxu0
    %s569 = smul.u32 6, 2
    %s570 = smul.addr %s569, 8
    %s571 = scalar_lea.vmem [#allocation2], %s570
    %v572 = vld [vmem:[%s571 + $0x8] sm:$0xff]
    %573 = vrot.lane.b32.xlu0 %v480, 64
    %v574 = vpop.permute.xlu0 %573
    %v575 = vsel %vm285, %v574, 0
    %577 = vmatprep.subr.mxu0 0.0
    %578 = vmatpush1.msra.mxu0 %v277
    %579 = vmatprep.subr.mxu0 0.0
    %580 = vmatpush1.msra.mxu0 %v278
    %581 = vmatprep.subr.mxu0 0.0
    %582 = vmatpush1.msra.mxu0 %v279
    %583 = vmatprep.subr.mxu0 0.0
    %584 = vmatpush1.msra.mxu0 %v280
    %585 = vmatprep.subr.mxu0 0.0
    %586 = vmatpush1.msra.mxu0 0.0
    %587 = vmatprep.subr.mxu0 0.0
    %588 = vmatpush1.msra.mxu0 0.0
    %589 = vmatprep.subr.mxu0 0.0
    %590 = vmatpush1.msra.mxu0 0.0
    %591 = vmatprep.subr.mxu0 0.0
    %592 = vmatpush1.msra.mxu0 0.0
    %593 = vmatprep.subr.mxu0 0.0
    %594 = vmatpush1.msra.mxu0 0.0
    %595 = vmatprep.subr.mxu0 0.0
    %596 = vmatpush1.msra.mxu0 0.0
    %597 = vmatprep.subr.mxu0 0.0
    %598 = vmatpush1.msra.mxu0 0.0
    %599 = vmatprep.subr.mxu0 0.0
    %600 = vmatpush1.msra.mxu0 0.0
    %601 = vmatprep.subr.mxu0 0.0
    %602 = vmatpush1.msra.mxu0 0.0
    %603 = vmatprep.subr.mxu0 0.0
    %604 = vmatpush1.msra.mxu0 0.0
    %605 = vmatprep.subr.mxu0 0.0
    %606 = vmatpush1.msra.mxu0 0.0
    %607 = vmatprep.subr.mxu0 0.0
    %608 = vmatpush1.msra.mxu0 0.0
    %609 = vmatprep.subr.mxu0 0.0
    %610 = vmatpush1.msra.mxu0 0.0
    %611 = vmatprep.subr.mxu0 0.0
    %612 = vmatpush1.msra.mxu0 0.0
    %613 = vmatprep.subr.mxu0 0.0
    %614 = vmatpush1.msra.mxu0 0.0
    %615 = vmatprep.subr.mxu0 0.0
    %616 = vmatpush1.msra.mxu0 0.0
    %617 = vmatprep.subr.mxu0 0.0
    %618 = vmatpush1.msra.mxu0 0.0
    %619 = vmatprep.subr.mxu0 0.0
    %620 = vmatpush1.msra.mxu0 0.0
    %621 = vmatprep.subr.mxu0 0.0
    %622 = vmatpush1.msra.mxu0 0.0
    %623 = vmatprep.subr.mxu0 0.0
    %624 = vmatpush1.msra.mxu0 0.0
    %625 = vmatprep.subr.mxu0 0.0
    %626 = vmatpush1.msra.mxu0 0.0
    %627 = vmatprep.subr.mxu0 0.0
    %628 = vmatpush1.msra.mxu0 0.0
    %629 = vmatprep.subr.mxu0 0.0
    %630 = vmatpush1.msra.mxu0 0.0
    %631 = vmatprep.subr.mxu0 0.0
    %632 = vmatpush1.msra.mxu0 0.0
    %633 = vmatprep.subr.mxu0 0.0
    %634 = vmatpush1.msra.mxu0 0.0
    %635 = vmatprep.subr.mxu0 0.0
    %636 = vmatpush1.msra.mxu0 0.0
    %637 = vmatprep.subr.mxu0 0.0
    %638 = vmatpush1.msra.mxu0 0.0
    %639 = vmatprep.subr.mxu0 0.0
    %640 = vmatpush1.msra.mxu0 0.0
    %641 = vmatprep.mubr.f32.mxu0 0.0
    %642 = vmatmul.mubr.f32.gmra.mrb[0].mxu0 %v575
    %v643 = vpop.f32.mrb[0].mxu0
    %v644 = vadd.f32 %v572, %v643
    %v645 = vpop.f32.mrb[0].mxu0
    %646 = vdwg.mxu0
    %v647 = vxor.u32 %v566, 2147483648
    %v648 = vmul.f32 %v647, 1.442695
    %v649 = vpow.pop %v648
    %v650 = vadd.f32 %v649, 1.0
    %v651 = vrcp.pop %v650
    %v652 = vmul.f32 1.0, %v651
    %v653 = vtanh.pop %v566
    %v654 = vxor.u32 %v644, 2147483648
    %v655 = vmul.f32 %v654, 1.442695
    %v656 = vpow.pop %v655
    %v657 = vadd.f32 %v656, 1.0
    %v658 = vrcp.pop %v657
    %v659 = vmul.f32 1.0, %v658
    %v660 = vtanh.pop %v644
    %v661 = vmul.f32 %v652, %v457
    %663 = vrot.lane.b32.xlu0 %v653, 32
    %v664 = vpop.permute.xlu0 %663
    %v666 = vmul.f32 %v652, %v664
    %668 = vrot.lane.b32.xlu0 %v666, 32
    %v669 = vpop.permute.xlu0 %668
    %v671 = vadd.f32 %v661, %v669
    %v672 = vtanh.pop %v671
    %674 = vrot.lane.b32.xlu0 %v672, 32
    %v675 = vpop.permute.xlu0 %674
    %v677 = vmul.f32 %v652, %v675
    %v678 = vmul.f32 %v659, %v474
    %680 = vrot.lane.b32.xlu0 %v660, 32
    %v681 = vpop.permute.xlu0 %680
    %v683 = vmul.f32 %v659, %v681
    %685 = vrot.lane.b32.xlu0 %v683, 32
    %v686 = vpop.permute.xlu0 %685
    %v688 = vadd.f32 %v678, %v686
    %v689 = vtanh.pop %v688
    %691 = vrot.lane.b32.xlu0 %v689, 32
    %v692 = vpop.permute.xlu0 %691
    %v694 = vmul.f32 %v659, %v692
    %696 = vrot.lane.b32.xlu0 %v677, 64
    %v697 = vpop.permute.xlu0 %696
    %s699 = scalar_lea.vmem [#allocation3], 8
    %700 = vst.msk [vmem:[%s699] sm:$0xff] %vm285, %v697
    %702 = vrot.lane.b32.xlu0 %v694, 96
    %v703 = vpop.permute.xlu0 %702
    %s705 = scalar_lea.vmem [#allocation3], 48
    %706 = vst.msk [vmem:[%s705] sm:$0xff] %vm491, %v703
    %s707 = smul.u32 2, 2
    %s708 = smul.addr %s707, 8
    %s709 = scalar_lea.vmem [#allocation2], %s708
    %v710 = vld [vmem:[%s709] sm:$0xff]
    %v711 = vsel %vm285, %v697, 0
    %713 = vmatprep.subr.mxu0 0.0
    %714 = vmatpush1.msra.mxu0 %v273
    %715 = vmatprep.subr.mxu0 0.0
    %716 = vmatpush1.msra.mxu0 %v274
    %717 = vmatprep.subr.mxu0 0.0
    %718 = vmatpush1.msra.mxu0 %v275
    %719 = vmatprep.subr.mxu0 0.0
    %720 = vmatpush1.msra.mxu0 %v276
    %721 = vmatprep.subr.mxu0 0.0
    %722 = vmatpush1.msra.mxu0 0.0
    %723 = vmatprep.subr.mxu0 0.0
    %724 = vmatpush1.msra.mxu0 0.0
    %725 = vmatprep.subr.mxu0 0.0
    %726 = vmatpush1.msra.mxu0 0.0
    %727 = vmatprep.subr.mxu0 0.0
    %728 = vmatpush1.msra.mxu0 0.0
    %729 = vmatprep.subr.mxu0 0.0
    %730 = vmatpush1.msra.mxu0 0.0
    %731 = vmatprep.subr.mxu0 0.0
    %732 = vmatpush1.msra.mxu0 0.0
    %733 = vmatprep.subr.mxu0 0.0
    %734 = vmatpush1.msra.mxu0 0.0
    %735 = vmatprep.subr.mxu0 0.0
    %736 = vmatpush1.msra.mxu0 0.0
    %737 = vmatprep.subr.mxu0 0.0
    %738 = vmatpush1.msra.mxu0 0.0
    %739 = vmatprep.subr.mxu0 0.0
    %740 = vmatpush1.msra.mxu0 0.0
    %741 = vmatprep.subr.mxu0 0.0
    %742 = vmatpush1.msra.mxu0 0.0
    %743 = vmatprep.subr.mxu0 0.0
    %744 = vmatpush1.msra.mxu0 0.0
    %745 = vmatprep.subr.mxu0 0.0
    %746 = vmatpush1.msra.mxu0 0.0
    %747 = vmatprep.subr.mxu0 0.0
    %748 = vmatpush1.msra.mxu0 0.0
    %749 = vmatprep.subr.mxu0 0.0
    %750 = vmatpush1.msra.mxu0 0.0
    %751 = vmatprep.subr.mxu0 0.0
    %752 = vmatpush1.msra.mxu0 0.0
    %753 = vmatprep.subr.mxu0 0.0
    %754 = vmatpush1.msra.mxu0 0.0
    %755 = vmatprep.subr.mxu0 0.0
    %756 = vmatpush1.msra.mxu0 0.0
    %757 = vmatprep.subr.mxu0 0.0
    %758 = vmatpush1.msra.mxu0 0.0
    %759 = vmatprep.subr.mxu0 0.0
    %760 = vmatpush1.msra.mxu0 0.0
    %761 = vmatprep.subr.mxu0 0.0
    %762 = vmatpush1.msra.mxu0 0.0
    %763 = vmatprep.subr.mxu0 0.0
    %764 = vmatpush1.msra.mxu0 0.0
    %765 = vmatprep.subr.mxu0 0.0
    %766 = vmatpush1.msra.mxu0 0.0
    %767 = vmatprep.subr.mxu0 0.0
    %768 = vmatpush1.msra.mxu0 0.0
    %769 = vmatprep.subr.mxu0 0.0
    %770 = vmatpush1.msra.mxu0 0.0
    %771 = vmatprep.subr.mxu0 0.0
    %772 = vmatpush1.msra.mxu0 0.0
    %773 = vmatprep.subr.mxu0 0.0
    %774 = vmatpush1.msra.mxu0 0.0
    %775 = vmatprep.subr.mxu0 0.0
    %776 = vmatpush1.msra.mxu0 0.0
    %777 = vmatprep.mubr.f32.mxu0 0.0
    %778 = vmatmul.mubr.f32.gmra.mrb[0].mxu0 %v711
    %v779 = vpop.f32.mrb[0].mxu0
    %v780 = vadd.f32 %v710, %v779
    %v781 = vpop.f32.mrb[0].mxu0
    %782 = vdwg.mxu0
    %s783 = smul.u32 5, 2
    %s784 = smul.addr %s783, 8
    %s785 = scalar_lea.vmem [#allocation2], %s784
    %v786 = vld [vmem:[%s785 + $0x8] sm:$0xff]
    %787 = vrot.lane.b32.xlu0 %v694, 64
    %v788 = vpop.permute.xlu0 %787
    %v789 = vsel %vm285, %v788, 0
    %791 = vmatprep.subr.mxu0 0.0
    %792 = vmatpush1.msra.mxu0 %v277
    %793 = vmatprep.subr.mxu0 0.0
    %794 = vmatpush1.msra.mxu0 %v278
    %795 = vmatprep.subr.mxu0 0.0
    %796 = vmatpush1.msra.mxu0 %v279
    %797 = vmatprep.subr.mxu0 0.0
    %798 = vmatpush1.msra.mxu0 %v280
    %799 = vmatprep.subr.mxu0 0.0
    %800 = vmatpush1.msra.mxu0 0.0
    %801 = vmatprep.subr.mxu0 0.0
    %802 = vmatpush1.msra.mxu0 0.0
    %803 = vmatprep.subr.mxu0 0.0
    %804 = vmatpush1.msra.mxu0 0.0
    %805 = vmatprep.subr.mxu0 0.0
    %806 = vmatpush1.msra.mxu0 0.0
    %807 = vmatprep.subr.mxu0 0.0
    %808 = vmatpush1.msra.mxu0 0.0
    %809 = vmatprep.subr.mxu0 0.0
    %810 = vmatpush1.msra.mxu0 0.0
    %811 = vmatprep.subr.mxu0 0.0
    %812 = vmatpush1.msra.mxu0 0.0
    %813 = vmatprep.subr.mxu0 0.0
    %814 = vmatpush1.msra.mxu0 0.0
    %815 = vmatprep.subr.mxu0 0.0
    %816 = vmatpush1.msra.mxu0 0.0
    %817 = vmatprep.subr.mxu0 0.0
    %818 = vmatpush1.msra.mxu0 0.0
    %819 = vmatprep.subr.mxu0 0.0
    %820 = vmatpush1.msra.mxu0 0.0
    %821 = vmatprep.subr.mxu0 0.0
    %822 = vmatpush1.msra.mxu0 0.0
    %823 = vmatprep.subr.mxu0 0.0
    %824 = vmatpush1.msra.mxu0 0.0
    %825 = vmatprep.subr.mxu0 0.0
    %826 = vmatpush1.msra.mxu0 0.0
    %827 = vmatprep.subr.mxu0 0.0
    %828 = vmatpush1.msra.mxu0 0.0
    %829 = vmatprep.subr.mxu0 0.0
    %830 = vmatpush1.msra.mxu0 0.0
    %831 = vmatprep.subr.mxu0 0.0
    %832 = vmatpush1.msra.mxu0 0.0
    %833 = vmatprep.subr.mxu0 0.0
    %834 = vmatpush1.msra.mxu0 0.0
    %835 = vmatprep.subr.mxu0 0.0
    %836 = vmatpush1.msra.mxu0 0.0
    %837 = vmatprep.subr.mxu0 0.0
    %838 = vmatpush1.msra.mxu0 0.0
    %839 = vmatprep.subr.mxu0 0.0
    %840 = vmatpush1.msra.mxu0 0.0
    %841 = vmatprep.subr.mxu0 0.0
    %842 = vmatpush1.msra.mxu0 0.0
    %843 = vmatprep.subr.mxu0 0.0
    %844 = vmatpush1.msra.mxu0 0.0
    %845 = vmatprep.subr.mxu0 0.0
    %846 = vmatpush1.msra.mxu0 0.0
    %847 = vmatprep.subr.mxu0 0.0
    %848 = vmatpush1.msra.mxu0 0.0
    %849 = vmatprep.subr.mxu0 0.0
    %850 = vmatpush1.msra.mxu0 0.0
    %851 = vmatprep.subr.mxu0 0.0
    %852 = vmatpush1.msra.mxu0 0.0
    %853 = vmatprep.subr.mxu0 0.0
    %854 = vmatpush1.msra.mxu0 0.0
    %855 = vmatprep.mubr.f32.mxu0 0.0
    %856 = vmatmul.mubr.f32.gmra.mrb[0].mxu0 %v789
    %v857 = vpop.f32.mrb[0].mxu0
    %v858 = vadd.f32 %v786, %v857
    %v859 = vpop.f32.mrb[0].mxu0
    %860 = vdwg.mxu0
    %v861 = vxor.u32 %v780, 2147483648
    %v862 = vmul.f32 %v861, 1.442695
    %v863 = vpow.pop %v862
    %v864 = vadd.f32 %v863, 1.0
    %v865 = vrcp.pop %v864
    %v866 = vmul.f32 1.0, %v865
    %v867 = vtanh.pop %v780
    %v868 = vxor.u32 %v858, 2147483648
    %v869 = vmul.f32 %v868, 1.442695
    %v870 = vpow.pop %v869
    %v871 = vadd.f32 %v870, 1.0
    %v872 = vrcp.pop %v871
    %v873 = vmul.f32 1.0, %v872
    %v874 = vtanh.pop %v858
    %v875 = vmul.f32 %v866, %v671
    %877 = vrot.lane.b32.xlu0 %v867, 32
    %v878 = vpop.permute.xlu0 %877
    %v880 = vmul.f32 %v866, %v878
    %882 = vrot.lane.b32.xlu0 %v880, 32
    %v883 = vpop.permute.xlu0 %882
    %v885 = vadd.f32 %v875, %v883
    %v886 = vtanh.pop %v885
    %888 = vrot.lane.b32.xlu0 %v886, 32
    %v889 = vpop.permute.xlu0 %888
    %v891 = vmul.f32 %v866, %v889
    %v892 = vmul.f32 %v873, %v688
    %894 = vrot.lane.b32.xlu0 %v874, 32
    %v895 = vpop.permute.xlu0 %894
    %v897 = vmul.f32 %v873, %v895
    %899 = vrot.lane.b32.xlu0 %v897, 32
    %v900 = vpop.permute.xlu0 %899
    %v902 = vadd.f32 %v892, %v900
    %v903 = vtanh.pop %v902
    %905 = vrot.lane.b32.xlu0 %v903, 32
    %v906 = vpop.permute.xlu0 %905
    %v908 = vmul.f32 %v873, %v906
    %910 = vrot.lane.b32.xlu0 %v891, 64
    %v911 = vpop.permute.xlu0 %910
    %s913 = scalar_lea.vmem [#allocation3], 16
    %914 = vst.msk [vmem:[%s913] sm:$0xff] %vm285, %v911
    %916 = vrot.lane.b32.xlu0 %v908, 96
    %v917 = vpop.permute.xlu0 %916
    %s919 = scalar_lea.vmem [#allocation3], 40
    %920 = vst.msk [vmem:[%s919] sm:$0xff] %vm491, %v917
    %s921 = smul.u32 3, 2
    %s922 = smul.addr %s921, 8
    %s923 = scalar_lea.vmem [#allocation2], %s922
    %v924 = vld [vmem:[%s923] sm:$0xff]
    %v925 = vsel %vm285, %v911, 0
    %927 = vmatprep.subr.mxu0 0.0
    %928 = vmatpush1.msra.mxu0 %v273
    %929 = vmatprep.subr.mxu0 0.0
    %930 = vmatpush1.msra.mxu0 %v274
    %931 = vmatprep.subr.mxu0 0.0
    %932 = vmatpush1.msra.mxu0 %v275
    %933 = vmatprep.subr.mxu0 0.0
    %934 = vmatpush1.msra.mxu0 %v276
    %935 = vmatprep.subr.mxu0 0.0
    %936 = vmatpush1.msra.mxu0 0.0
    %937 = vmatprep.subr.mxu0 0.0
    %938 = vmatpush1.msra.mxu0 0.0
    %939 = vmatprep.subr.mxu0 0.0
    %940 = vmatpush1.msra.mxu0 0.0
    %941 = vmatprep.subr.mxu0 0.0
    %942 = vmatpush1.msra.mxu0 0.0
    %943 = vmatprep.subr.mxu0 0.0
    %944 = vmatpush1.msra.mxu0 0.0
    %945 = vmatprep.subr.mxu0 0.0
    %946 = vmatpush1.msra.mxu0 0.0
    %947 = vmatprep.subr.mxu0 0.0
    %948 = vmatpush1.msra.mxu0 0.0
    %949 = vmatprep.subr.mxu0 0.0
    %950 = vmatpush1.msra.mxu0 0.0
    %951 = vmatprep.subr.mxu0 0.0
    %952 = vmatpush1.msra.mxu0 0.0
    %953 = vmatprep.subr.mxu0 0.0
    %954 = vmatpush1.msra.mxu0 0.0
    %955 = vmatprep.subr.mxu0 0.0
    %956 = vmatpush1.msra.mxu0 0.0
    %957 = vmatprep.subr.mxu0 0.0
    %958 = vmatpush1.msra.mxu0 0.0
    %959 = vmatprep.subr.mxu0 0.0
    %960 = vmatpush1.msra.mxu0 0.0
    %961 = vmatprep.subr.mxu0 0.0
    %962 = vmatpush1.msra.mxu0 0.0
    %963 = vmatprep.subr.mxu0 0.0
    %964 = vmatpush1.msra.mxu0 0.0
    %965 = vmatprep.subr.mxu0 0.0
    %966 = vmatpush1.msra.mxu0 0.0
    %967 = vmatprep.subr.mxu0 0.0
    %968 = vmatpush1.msra.mxu0 0.0
    %969 = vmatprep.subr.mxu0 0.0
    %970 = vmatpush1.msra.mxu0 0.0
    %971 = vmatprep.subr.mxu0 0.0
    %972 = vmatpush1.msra.mxu0 0.0
    %973 = vmatprep.subr.mxu0 0.0
    %974 = vmatpush1.msra.mxu0 0.0
    %975 = vmatprep.subr.mxu0 0.0
    %976 = vmatpush1.msra.mxu0 0.0
    %977 = vmatprep.subr.mxu0 0.0
    %978 = vmatpush1.msra.mxu0 0.0
    %979 = vmatprep.subr.mxu0 0.0
    %980 = vmatpush1.msra.mxu0 0.0
    %981 = vmatprep.subr.mxu0 0.0
    %982 = vmatpush1.msra.mxu0 0.0
    %983 = vmatprep.subr.mxu0 0.0
    %984 = vmatpush1.msra.mxu0 0.0
    %985 = vmatprep.subr.mxu0 0.0
    %986 = vmatpush1.msra.mxu0 0.0
    %987 = vmatprep.subr.mxu0 0.0
    %988 = vmatpush1.msra.mxu0 0.0
    %989 = vmatprep.subr.mxu0 0.0
    %990 = vmatpush1.msra.mxu0 0.0
    %991 = vmatprep.mubr.f32.mxu0 0.0
    %992 = vmatmul.mubr.f32.gmra.mrb[0].mxu0 %v925
    %v993 = vpop.f32.mrb[0].mxu0
    %v994 = vadd.f32 %v924, %v993
    %v995 = vpop.f32.mrb[0].mxu0
    %996 = vdwg.mxu0
    %s997 = smul.u32 4, 2
    %s998 = smul.addr %s997, 8
    %s999 = scalar_lea.vmem [#allocation2], %s998
    %v1000 = vld [vmem:[%s999 + $0x8] sm:$0xff]
    %1001 = vrot.lane.b32.xlu0 %v908, 64
    %v1002 = vpop.permute.xlu0 %1001
    %v1003 = vsel %vm285, %v1002, 0
    %1005 = vmatprep.subr.mxu0 0.0
    %1006 = vmatpush1.msra.mxu0 %v277
    %1007 = vmatprep.subr.mxu0 0.0
    %1008 = vmatpush1.msra.mxu0 %v278
    %1009 = vmatprep.subr.mxu0 0.0
    %1010 = vmatpush1.msra.mxu0 %v279
    %1011 = vmatprep.subr.mxu0 0.0
    %1012 = vmatpush1.msra.mxu0 %v280
    %1013 = vmatprep.subr.mxu0 0.0
    %1014 = vmatpush1.msra.mxu0 0.0
    %1015 = vmatprep.subr.mxu0 0.0
    %1016 = vmatpush1.msra.mxu0 0.0
    %1017 = vmatprep.subr.mxu0 0.0
    %1018 = vmatpush1.msra.mxu0 0.0
    %1019 = vmatprep.subr.mxu0 0.0
    %1020 = vmatpush1.msra.mxu0 0.0
    %1021 = vmatprep.subr.mxu0 0.0
    %1022 = vmatpush1.msra.mxu0 0.0
    %1023 = vmatprep.subr.mxu0 0.0
    %1024 = vmatpush1.msra.mxu0 0.0
    %1025 = vmatprep.subr.mxu0 0.0
    %1026 = vmatpush1.msra.mxu0 0.0
    %1027 = vmatprep.subr.mxu0 0.0
    %1028 = vmatpush1.msra.mxu0 0.0
    %1029 = vmatprep.subr.mxu0 0.0
    %1030 = vmatpush1.msra.mxu0 0.0
    %1031 = vmatprep.subr.mxu0 0.0
    %1032 = vmatpush1.msra.mxu0 0.0
    %1033 = vmatprep.subr.mxu0 0.0
    %1034 = vmatpush1.msra.mxu0 0.0
    %1035 = vmatprep.subr.mxu0 0.0
    %1036 = vmatpush1.msra.mxu0 0.0
    %1037 = vmatprep.subr.mxu0 0.0
    %1038 = vmatpush1.msra.mxu0 0.0
    %1039 = vmatprep.subr.mxu0 0.0
    %1040 = vmatpush1.msra.mxu0 0.0
    %1041 = vmatprep.subr.mxu0 0.0
    %1042 = vmatpush1.msra.mxu0 0.0
    %1043 = vmatprep.subr.mxu0 0.0
    %1044 = vmatpush1.msra.mxu0 0.0
    %1045 = vmatprep.subr.mxu0 0.0
    %1046 = vmatpush1.msra.mxu0 0.0
    %1047 = vmatprep.subr.mxu0 0.0
    %1048 = vmatpush1.msra.mxu0 0.0
    %1049 = vmatprep.subr.mxu0 0.0
    %1050 = vmatpush1.msra.mxu0 0.0
    %1051 = vmatprep.subr.mxu0 0.0
    %1052 = vmatpush1.msra.mxu0 0.0
    %1053 = vmatprep.subr.mxu0 0.0
    %1054 = vmatpush1.msra.mxu0 0.0
    %1055 = vmatprep.subr.mxu0 0.0
    %1056 = vmatpush1.msra.mxu0 0.0
    %1057 = vmatprep.subr.mxu0 0.0
    %1058 = vmatpush1.msra.mxu0 0.0
    %1059 = vmatprep.subr.mxu0 0.0
    %1060 = vmatpush1.msra.mxu0 0.0
    %1061 = vmatprep.subr.mxu0 0.0
    %1062 = vmatpush1.msra.mxu0 0.0
    %1063 = vmatprep.subr.mxu0 0.0
    %1064 = vmatpush1.msra.mxu0 0.0
    %1065 = vmatprep.subr.mxu0 0.0
    %1066 = vmatpush1.msra.mxu0 0.0
    %1067 = vmatprep.subr.mxu0 0.0
    %1068 = vmatpush1.msra.mxu0 0.0
    %1069 = vmatprep.mubr.f32.mxu0 0.0
    %1070 = vmatmul.mubr.f32.gmra.mrb[0].mxu0 %v1003
    %v1071 = vpop.f32.mrb[0].mxu0
    %v1072 = vadd.f32 %v1000, %v1071
    %v1073 = vpop.f32.mrb[0].mxu0
    %1074 = vdwg.mxu0
    %v1075 = vxor.u32 %v994, 2147483648
    %v1076 = vmul.f32 %v1075, 1.442695
    %v1077 = vpow.pop %v1076
    %v1078 = vadd.f32 %v1077, 1.0
    %v1079 = vrcp.pop %v1078
    %v1080 = vmul.f32 1.0, %v1079
    %v1081 = vtanh.pop %v994
    %v1082 = vxor.u32 %v1072, 2147483648
    %v1083 = vmul.f32 %v1082, 1.442695
    %v1084 = vpow.pop %v1083
    %v1085 = vadd.f32 %v1084, 1.0
    %v1086 = vrcp.pop %v1085
    %v1087 = vmul.f32 1.0, %v1086
    %v1088 = vtanh.pop %v1072
    %v1089 = vmul.f32 %v1080, %v885
    %1091 = vrot.lane.b32.xlu0 %v1081, 32
    %v1092 = vpop.permute.xlu0 %1091
    %v1094 = vmul.f32 %v1080, %v1092
    %1096 = vrot.lane.b32.xlu0 %v1094, 32
    %v1097 = vpop.permute.xlu0 %1096
    %v1099 = vadd.f32 %v1089, %v1097
    %v1100 = vtanh.pop %v1099
    %1102 = vrot.lane.b32.xlu0 %v1100, 32
    %v1103 = vpop.permute.xlu0 %1102
    %v1105 = vmul.f32 %v1080, %v1103
    %v1106 = vmul.f32 %v1087, %v902
    %1108 = vrot.lane.b32.xlu0 %v1088, 32
    %v1109 = vpop.permute.xlu0 %1108
    %v1111 = vmul.f32 %v1087, %v1109
    %1113 = vrot.lane.b32.xlu0 %v1111, 32
    %v1114 = vpop.permute.xlu0 %1113
    %v1116 = vadd.f32 %v1106, %v1114
    %v1117 = vtanh.pop %v1116
    %1119 = vrot.lane.b32.xlu0 %v1117, 32
    %v1120 = vpop.permute.xlu0 %1119
    %v1122 = vmul.f32 %v1087, %v1120
    %1124 = vrot.lane.b32.xlu0 %v1105, 64
    %v1125 = vpop.permute.xlu0 %1124
    %s1127 = scalar_lea.vmem [#allocation3], 24
    %1128 = vst.msk [vmem:[%s1127] sm:$0xff] %vm285, %v1125
    %1130 = vrot.lane.b32.xlu0 %v1122, 96
    %v1131 = vpop.permute.xlu0 %1130
    %s1133 = scalar_lea.vmem [#allocation3], 32
    %1134 = vst.msk [vmem:[%s1133] sm:$0xff] %vm491, %v1131
    %v1135 = vld [vmem:[%s999] sm:$0xff]
    %v1136 = vsel %vm285, %v1125, 0
    %1138 = vmatprep.subr.mxu0 0.0
    %1139 = vmatpush1.msra.mxu0 %v273
    %1140 = vmatprep.subr.mxu0 0.0
    %1141 = vmatpush1.msra.mxu0 %v274
    %1142 = vmatprep.subr.mxu0 0.0
    %1143 = vmatpush1.msra.mxu0 %v275
    %1144 = vmatprep.subr.mxu0 0.0
    %1145 = vmatpush1.msra.mxu0 %v276
    %1146 = vmatprep.subr.mxu0 0.0
    %1147 = vmatpush1.msra.mxu0 0.0
    %1148 = vmatprep.subr.mxu0 0.0
    %1149 = vmatpush1.msra.mxu0 0.0
    %1150 = vmatprep.subr.mxu0 0.0
    %1151 = vmatpush1.msra.mxu0 0.0
    %1152 = vmatprep.subr.mxu0 0.0
    %1153 = vmatpush1.msra.mxu0 0.0
    %1154 = vmatprep.subr.mxu0 0.0
    %1155 = vmatpush1.msra.mxu0 0.0
    %1156 = vmatprep.subr.mxu0 0.0
    %1157 = vmatpush1.msra.mxu0 0.0
    %1158 = vmatprep.subr.mxu0 0.0
    %1159 = vmatpush1.msra.mxu0 0.0
    %1160 = vmatprep.subr.mxu0 0.0
    %1161 = vmatpush1.msra.mxu0 0.0
    %1162 = vmatprep.subr.mxu0 0.0
    %1163 = vmatpush1.msra.mxu0 0.0
    %1164 = vmatprep.subr.mxu0 0.0
    %1165 = vmatpush1.msra.mxu0 0.0
    %1166 = vmatprep.subr.mxu0 0.0
    %1167 = vmatpush1.msra.mxu0 0.0
    %1168 = vmatprep.subr.mxu0 0.0
    %1169 = vmatpush1.msra.mxu0 0.0
    %1170 = vmatprep.subr.mxu0 0.0
    %1171 = vmatpush1.msra.mxu0 0.0
    %1172 = vmatprep.subr.mxu0 0.0
    %1173 = vmatpush1.msra.mxu0 0.0
    %1174 = vmatprep.subr.mxu0 0.0
    %1175 = vmatpush1.msra.mxu0 0.0
    %1176 = vmatprep.subr.mxu0 0.0
    %1177 = vmatpush1.msra.mxu0 0.0
    %1178 = vmatprep.subr.mxu0 0.0
    %1179 = vmatpush1.msra.mxu0 0.0
    %1180 = vmatprep.subr.mxu0 0.0
    %1181 = vmatpush1.msra.mxu0 0.0
    %1182 = vmatprep.subr.mxu0 0.0
    %1183 = vmatpush1.msra.mxu0 0.0
    %1184 = vmatprep.subr.mxu0 0.0
    %1185 = vmatpush1.msra.mxu0 0.0
    %1186 = vmatprep.subr.mxu0 0.0
    %1187 = vmatpush1.msra.mxu0 0.0
    %1188 = vmatprep.subr.mxu0 0.0
    %1189 = vmatpush1.msra.mxu0 0.0
    %1190 = vmatprep.subr.mxu0 0.0
    %1191 = vmatpush1.msra.mxu0 0.0
    %1192 = vmatprep.subr.mxu0 0.0
    %1193 = vmatpush1.msra.mxu0 0.0
    %1194 = vmatprep.subr.mxu0 0.0
    %1195 = vmatpush1.msra.mxu0 0.0
    %1196 = vmatprep.subr.mxu0 0.0
    %1197 = vmatpush1.msra.mxu0 0.0
    %1198 = vmatprep.subr.mxu0 0.0
    %1199 = vmatpush1.msra.mxu0 0.0
    %1200 = vmatprep.subr.mxu0 0.0
    %1201 = vmatpush1.msra.mxu0 0.0
    %1202 = vmatprep.mubr.f32.mxu0 0.0
    %1203 = vmatmul.mubr.f32.gmra.mrb[0].mxu0 %v1136
    %v1204 = vpop.f32.mrb[0].mxu0
    %v1205 = vadd.f32 %v1135, %v1204
    %v1206 = vpop.f32.mrb[0].mxu0
    %1207 = vdwg.mxu0
    %v1208 = vld [vmem:[%s923 + $0x8] sm:$0xff]
    %1209 = vrot.lane.b32.xlu0 %v1122, 64
    %v1210 = vpop.permute.xlu0 %1209
    %v1211 = vsel %vm285, %v1210, 0
    %1213 = vmatprep.subr.mxu0 0.0
    %1214 = vmatpush1.msra.mxu0 %v277
    %1215 = vmatprep.subr.mxu0 0.0
    %1216 = vmatpush1.msra.mxu0 %v278
    %1217 = vmatprep.subr.mxu0 0.0
    %1218 = vmatpush1.msra.mxu0 %v279
    %1219 = vmatprep.subr.mxu0 0.0
    %1220 = vmatpush1.msra.mxu0 %v280
    %1221 = vmatprep.subr.mxu0 0.0
    %1222 = vmatpush1.msra.mxu0 0.0
    %1223 = vmatprep.subr.mxu0 0.0
    %1224 = vmatpush1.msra.mxu0 0.0
    %1225 = vmatprep.subr.mxu0 0.0
    %1226 = vmatpush1.msra.mxu0 0.0
    %1227 = vmatprep.subr.mxu0 0.0
    %1228 = vmatpush1.msra.mxu0 0.0
    %1229 = vmatprep.subr.mxu0 0.0
    %1230 = vmatpush1.msra.mxu0 0.0
    %1231 = vmatprep.subr.mxu0 0.0
    %1232 = vmatpush1.msra.mxu0 0.0
    %1233 = vmatprep.subr.mxu0 0.0
    %1234 = vmatpush1.msra.mxu0 0.0
    %1235 = vmatprep.subr.mxu0 0.0
    %1236 = vmatpush1.msra.mxu0 0.0
    %1237 = vmatprep.subr.mxu0 0.0
    %1238 = vmatpush1.msra.mxu0 0.0
    %1239 = vmatprep.subr.mxu0 0.0
    %1240 = vmatpush1.msra.mxu0 0.0
    %1241 = vmatprep.subr.mxu0 0.0
    %1242 = vmatpush1.msra.mxu0 0.0
    %1243 = vmatprep.subr.mxu0 0.0
    %1244 = vmatpush1.msra.mxu0 0.0
    %1245 = vmatprep.subr.mxu0 0.0
    %1246 = vmatpush1.msra.mxu0 0.0
    %1247 = vmatprep.subr.mxu0 0.0
    %1248 = vmatpush1.msra.mxu0 0.0
    %1249 = vmatprep.subr.mxu0 0.0
    %1250 = vmatpush1.msra.mxu0 0.0
    %1251 = vmatprep.subr.mxu0 0.0
    %1252 = vmatpush1.msra.mxu0 0.0
    %1253 = vmatprep.subr.mxu0 0.0
    %1254 = vmatpush1.msra.mxu0 0.0
    %1255 = vmatprep.subr.mxu0 0.0
    %1256 = vmatpush1.msra.mxu0 0.0
    %1257 = vmatprep.subr.mxu0 0.0
    %1258 = vmatpush1.msra.mxu0 0.0
    %1259 = vmatprep.subr.mxu0 0.0
    %1260 = vmatpush1.msra.mxu0 0.0
    %1261 = vmatprep.subr.mxu0 0.0
    %1262 = vmatpush1.msra.mxu0 0.0
    %1263 = vmatprep.subr.mxu0 0.0
    %1264 = vmatpush1.msra.mxu0 0.0
    %1265 = vmatprep.subr.mxu0 0.0
    %1266 = vmatpush1.msra.mxu0 0.0
    %1267 = vmatprep.subr.mxu0 0.0
    %1268 = vmatpush1.msra.mxu0 0.0
    %1269 = vmatprep.subr.mxu0 0.0
    %1270 = vmatpush1.msra.mxu0 0.0
    %1271 = vmatprep.subr.mxu0 0.0
    %1272 = vmatpush1.msra.mxu0 0.0
    %1273 = vmatprep.subr.mxu0 0.0
    %1274 = vmatpush1.msra.mxu0 0.0
    %1275 = vmatprep.subr.mxu0 0.0
    %1276 = vmatpush1.msra.mxu0 0.0
    %1277 = vmatprep.mubr.f32.mxu0 0.0
    %1278 = vmatmul.mubr.f32.gmra.mrb[0].mxu0 %v1211
    %v1279 = vpop.f32.mrb[0].mxu0
    %v1280 = vadd.f32 %v1208, %v1279
    %v1281 = vpop.f32.mrb[0].mxu0
    %1282 = vdwg.mxu0
    %v1283 = vxor.u32 %v1205, 2147483648
    %v1284 = vmul.f32 %v1283, 1.442695
    %v1285 = vpow.pop %v1284
    %v1286 = vadd.f32 %v1285, 1.0
    %v1287 = vrcp.pop %v1286
    %v1288 = vmul.f32 1.0, %v1287
    %v1289 = vtanh.pop %v1205
    %v1290 = vxor.u32 %v1280, 2147483648
    %v1291 = vmul.f32 %v1290, 1.442695
    %v1292 = vpow.pop %v1291
    %v1293 = vadd.f32 %v1292, 1.0
    %v1294 = vrcp.pop %v1293
    %v1295 = vmul.f32 1.0, %v1294
    %v1296 = vtanh.pop %v1280
    %v1297 = vmul.f32 %v1288, %v1099
    %1299 = vrot.lane.b32.xlu0 %v1289, 32
    %v1300 = vpop.permute.xlu0 %1299
    %v1302 = vmul.f32 %v1288, %v1300
    %1304 = vrot.lane.b32.xlu0 %v1302, 32
    %v1305 = vpop.permute.xlu0 %1304
    %v1307 = vadd.f32 %v1297, %v1305
    %v1308 = vtanh.pop %v1307
    %1310 = vrot.lane.b32.xlu0 %v1308, 32
    %v1311 = vpop.permute.xlu0 %1310
    %v1313 = vmul.f32 %v1288, %v1311
    %v1314 = vmul.f32 %v1295, %v1116
    %1316 = vrot.lane.b32.xlu0 %v1296, 32
    %v1317 = vpop.permute.xlu0 %1316
    %v1319 = vmul.f32 %v1295, %v1317
    %1321 = vrot.lane.b32.xlu0 %v1319, 32
    %v1322 = vpop.permute.xlu0 %1321
    %v1324 = vadd.f32 %v1314, %v1322
    %v1325 = vtanh.pop %v1324
    %1327 = vrot.lane.b32.xlu0 %v1325, 32
    %v1328 = vpop.permute.xlu0 %1327
    %v1330 = vmul.f32 %v1295, %v1328
    %1332 = vrot.lane.b32.xlu0 %v1313, 64
    %v1333 = vpop.permute.xlu0 %1332
    %1335 = vst.msk [vmem:[%s1133] sm:$0xff] %vm285, %v1333
    %1337 = vrot.lane.b32.xlu0 %v1330, 96
    %v1338 = vpop.permute.xlu0 %1337
    %1340 = vst.msk [vmem:[%s1127] sm:$0xff] %vm491, %v1338
    %v1341 = vld [vmem:[%s785] sm:$0xff]
    %v1342 = vsel %vm285, %v1333, 0
    %1344 = vmatprep.subr.mxu0 0.0
    %1345 = vmatpush1.msra.mxu0 %v273
    %1346 = vmatprep.subr.mxu0 0.0
    %1347 = vmatpush1.msra.mxu0 %v274
    %1348 = vmatprep.subr.mxu0 0.0
    %1349 = vmatpush1.msra.mxu0 %v275
    %1350 = vmatprep.subr.mxu0 0.0
    %1351 = vmatpush1.msra.mxu0 %v276
    %1352 = vmatprep.subr.mxu0 0.0
    %1353 = vmatpush1.msra.mxu0 0.0
    %1354 = vmatprep.subr.mxu0 0.0
    %1355 = vmatpush1.msra.mxu0 0.0
    %1356 = vmatprep.subr.mxu0 0.0
    %1357 = vmatpush1.msra.mxu0 0.0
    %1358 = vmatprep.subr.mxu0 0.0
    %1359 = vmatpush1.msra.mxu0 0.0
    %1360 = vmatprep.subr.mxu0 0.0
    %1361 = vmatpush1.msra.mxu0 0.0
    %1362 = vmatprep.subr.mxu0 0.0
    %1363 = vmatpush1.msra.mxu0 0.0
    %1364 = vmatprep.subr.mxu0 0.0
    %1365 = vmatpush1.msra.mxu0 0.0
    %1366 = vmatprep.subr.mxu0 0.0
    %1367 = vmatpush1.msra.mxu0 0.0
    %1368 = vmatprep.subr.mxu0 0.0
    %1369 = vmatpush1.msra.mxu0 0.0
    %1370 = vmatprep.subr.mxu0 0.0
    %1371 = vmatpush1.msra.mxu0 0.0
    %1372 = vmatprep.subr.mxu0 0.0
    %1373 = vmatpush1.msra.mxu0 0.0
    %1374 = vmatprep.subr.mxu0 0.0
    %1375 = vmatpush1.msra.mxu0 0.0
    %1376 = vmatprep.subr.mxu0 0.0
    %1377 = vmatpush1.msra.mxu0 0.0
    %1378 = vmatprep.subr.mxu0 0.0
    %1379 = vmatpush1.msra.mxu0 0.0
    %1380 = vmatprep.subr.mxu0 0.0
    %1381 = vmatpush1.msra.mxu0 0.0
    %1382 = vmatprep.subr.mxu0 0.0
    %1383 = vmatpush1.msra.mxu0 0.0
    %1384 = vmatprep.subr.mxu0 0.0
    %1385 = vmatpush1.msra.mxu0 0.0
    %1386 = vmatprep.subr.mxu0 0.0
    %1387 = vmatpush1.msra.mxu0 0.0
    %1388 = vmatprep.subr.mxu0 0.0
    %1389 = vmatpush1.msra.mxu0 0.0
    %1390 = vmatprep.subr.mxu0 0.0
    %1391 = vmatpush1.msra.mxu0 0.0
    %1392 = vmatprep.subr.mxu0 0.0
    %1393 = vmatpush1.msra.mxu0 0.0
    %1394 = vmatprep.subr.mxu0 0.0
    %1395 = vmatpush1.msra.mxu0 0.0
    %1396 = vmatprep.subr.mxu0 0.0
    %1397 = vmatpush1.msra.mxu0 0.0
    %1398 = vmatprep.subr.mxu0 0.0
    %1399 = vmatpush1.msra.mxu0 0.0
    %1400 = vmatprep.subr.mxu0 0.0
    %1401 = vmatpush1.msra.mxu0 0.0
    %1402 = vmatprep.subr.mxu0 0.0
    %1403 = vmatpush1.msra.mxu0 0.0
    %1404 = vmatprep.subr.mxu0 0.0
    %1405 = vmatpush1.msra.mxu0 0.0
    %1406 = vmatprep.subr.mxu0 0.0
    %1407 = vmatpush1.msra.mxu0 0.0
    %1408 = vmatprep.mubr.f32.mxu0 0.0
    %1409 = vmatmul.mubr.f32.gmra.mrb[0].mxu0 %v1342
    %v1410 = vpop.f32.mrb[0].mxu0
    %v1411 = vadd.f32 %v1341, %v1410
    %v1412 = vpop.f32.mrb[0].mxu0
    %1413 = vdwg.mxu0
    %v1414 = vld [vmem:[%s709 + $0x8] sm:$0xff]
    %1415 = vrot.lane.b32.xlu0 %v1330, 64
    %v1416 = vpop.permute.xlu0 %1415
    %v1417 = vsel %vm285, %v1416, 0
    %1419 = vmatprep.subr.mxu0 0.0
    %1420 = vmatpush1.msra.mxu0 %v277
    %1421 = vmatprep.subr.mxu0 0.0
    %1422 = vmatpush1.msra.mxu0 %v278
    %1423 = vmatprep.subr.mxu0 0.0
    %1424 = vmatpush1.msra.mxu0 %v279
    %1425 = vmatprep.subr.mxu0 0.0
    %1426 = vmatpush1.msra.mxu0 %v280
    %1427 = vmatprep.subr.mxu0 0.0
    %1428 = vmatpush1.msra.mxu0 0.0
    %1429 = vmatprep.subr.mxu0 0.0
    %1430 = vmatpush1.msra.mxu0 0.0
    %1431 = vmatprep.subr.mxu0 0.0
    %1432 = vmatpush1.msra.mxu0 0.0
    %1433 = vmatprep.subr.mxu0 0.0
    %1434 = vmatpush1.msra.mxu0 0.0
    %1435 = vmatprep.subr.mxu0 0.0
    %1436 = vmatpush1.msra.mxu0 0.0
    %1437 = vmatprep.subr.mxu0 0.0
    %1438 = vmatpush1.msra.mxu0 0.0
    %1439 = vmatprep.subr.mxu0 0.0
    %1440 = vmatpush1.msra.mxu0 0.0
    %1441 = vmatprep.subr.mxu0 0.0
    %1442 = vmatpush1.msra.mxu0 0.0
    %1443 = vmatprep.subr.mxu0 0.0
    %1444 = vmatpush1.msra.mxu0 0.0
    %1445 = vmatprep.subr.mxu0 0.0
    %1446 = vmatpush1.msra.mxu0 0.0
    %1447 = vmatprep.subr.mxu0 0.0
    %1448 = vmatpush1.msra.mxu0 0.0
    %1449 = vmatprep.subr.mxu0 0.0
    %1450 = vmatpush1.msra.mxu0 0.0
    %1451 = vmatprep.subr.mxu0 0.0
    %1452 = vmatpush1.msra.mxu0 0.0
    %1453 = vmatprep.subr.mxu0 0.0
    %1454 = vmatpush1.msra.mxu0 0.0
    %1455 = vmatprep.subr.mxu0 0.0
    %1456 = vmatpush1.msra.mxu0 0.0
    %1457 = vmatprep.subr.mxu0 0.0
    %1458 = vmatpush1.msra.mxu0 0.0
    %1459 = vmatprep.subr.mxu0 0.0
    %1460 = vmatpush1.msra.mxu0 0.0
    %1461 = vmatprep.subr.mxu0 0.0
    %1462 = vmatpush1.msra.mxu0 0.0
    %1463 = vmatprep.subr.mxu0 0.0
    %1464 = vmatpush1.msra.mxu0 0.0
    %1465 = vmatprep.subr.mxu0 0.0
    %1466 = vmatpush1.msra.mxu0 0.0
    %1467 = vmatprep.subr.mxu0 0.0
    %1468 = vmatpush1.msra.mxu0 0.0
    %1469 = vmatprep.subr.mxu0 0.0
    %1470 = vmatpush1.msra.mxu0 0.0
    %1471 = vmatprep.subr.mxu0 0.0
    %1472 = vmatpush1.msra.mxu0 0.0
    %1473 = vmatprep.subr.mxu0 0.0
    %1474 = vmatpush1.msra.mxu0 0.0
    %1475 = vmatprep.subr.mxu0 0.0
    %1476 = vmatpush1.msra.mxu0 0.0
    %1477 = vmatprep.subr.mxu0 0.0
    %1478 = vmatpush1.msra.mxu0 0.0
    %1479 = vmatprep.subr.mxu0 0.0
    %1480 = vmatpush1.msra.mxu0 0.0
    %1481 = vmatprep.subr.mxu0 0.0
    %1482 = vmatpush1.msra.mxu0 0.0
    %1483 = vmatprep.mubr.f32.mxu0 0.0
    %1484 = vmatmul.mubr.f32.gmra.mrb[0].mxu0 %v1417
    %v1485 = vpop.f32.mrb[0].mxu0
    %v1486 = vadd.f32 %v1414, %v1485
    %v1487 = vpop.f32.mrb[0].mxu0
    %1488 = vdwg.mxu0
    %v1489 = vxor.u32 %v1411, 2147483648
    %v1490 = vmul.f32 %v1489, 1.442695
    %v1491 = vpow.pop %v1490
    %v1492 = vadd.f32 %v1491, 1.0
    %v1493 = vrcp.pop %v1492
    %v1494 = vmul.f32 1.0, %v1493
    %v1495 = vtanh.pop %v1411
    %v1496 = vxor.u32 %v1486, 2147483648
    %v1497 = vmul.f32 %v1496, 1.442695
    %v1498 = vpow.pop %v1497
    %v1499 = vadd.f32 %v1498, 1.0
    %v1500 = vrcp.pop %v1499
    %v1501 = vmul.f32 1.0, %v1500
    %v1502 = vtanh.pop %v1486
    %v1503 = vmul.f32 %v1494, %v1307
    %1505 = vrot.lane.b32.xlu0 %v1495, 32
    %v1506 = vpop.permute.xlu0 %1505
    %v1508 = vmul.f32 %v1494, %v1506
    %1510 = vrot.lane.b32.xlu0 %v1508, 32
    %v1511 = vpop.permute.xlu0 %1510
    %v1513 = vadd.f32 %v1503, %v1511
    %v1514 = vtanh.pop %v1513
    %1516 = vrot.lane.b32.xlu0 %v1514, 32
    %v1517 = vpop.permute.xlu0 %1516
    %v1519 = vmul.f32 %v1494, %v1517
    %v1520 = vmul.f32 %v1501, %v1324
    %1522 = vrot.lane.b32.xlu0 %v1502, 32
    %v1523 = vpop.permute.xlu0 %1522
    %v1525 = vmul.f32 %v1501, %v1523
    %1527 = vrot.lane.b32.xlu0 %v1525, 32
    %v1528 = vpop.permute.xlu0 %1527
    %v1530 = vadd.f32 %v1520, %v1528
    %v1531 = vtanh.pop %v1530
    %1533 = vrot.lane.b32.xlu0 %v1531, 32
    %v1534 = vpop.permute.xlu0 %1533
    %v1536 = vmul.f32 %v1501, %v1534
    %1538 = vrot.lane.b32.xlu0 %v1519, 64
    %v1539 = vpop.permute.xlu0 %1538
    %1541 = vst.msk [vmem:[%s919] sm:$0xff] %vm285, %v1539
    %1543 = vrot.lane.b32.xlu0 %v1536, 96
    %v1544 = vpop.permute.xlu0 %1543
    %1546 = vst.msk [vmem:[%s913] sm:$0xff] %vm491, %v1544
    %v1547 = vld [vmem:[%s571] sm:$0xff]
    %v1548 = vsel %vm285, %v1539, 0
    %1550 = vmatprep.subr.mxu0 0.0
    %1551 = vmatpush1.msra.mxu0 %v273
    %1552 = vmatprep.subr.mxu0 0.0
    %1553 = vmatpush1.msra.mxu0 %v274
    %1554 = vmatprep.subr.mxu0 0.0
    %1555 = vmatpush1.msra.mxu0 %v275
    %1556 = vmatprep.subr.mxu0 0.0
    %1557 = vmatpush1.msra.mxu0 %v276
    %1558 = vmatprep.subr.mxu0 0.0
    %1559 = vmatpush1.msra.mxu0 0.0
    %1560 = vmatprep.subr.mxu0 0.0
    %1561 = vmatpush1.msra.mxu0 0.0
    %1562 = vmatprep.subr.mxu0 0.0
    %1563 = vmatpush1.msra.mxu0 0.0
    %1564 = vmatprep.subr.mxu0 0.0
    %1565 = vmatpush1.msra.mxu0 0.0
    %1566 = vmatprep.subr.mxu0 0.0
    %1567 = vmatpush1.msra.mxu0 0.0
    %1568 = vmatprep.subr.mxu0 0.0
    %1569 = vmatpush1.msra.mxu0 0.0
    %1570 = vmatprep.subr.mxu0 0.0
    %1571 = vmatpush1.msra.mxu0 0.0
    %1572 = vmatprep.subr.mxu0 0.0
    %1573 = vmatpush1.msra.mxu0 0.0
    %1574 = vmatprep.subr.mxu0 0.0
    %1575 = vmatpush1.msra.mxu0 0.0
    %1576 = vmatprep.subr.mxu0 0.0
    %1577 = vmatpush1.msra.mxu0 0.0
    %1578 = vmatprep.subr.mxu0 0.0
    %1579 = vmatpush1.msra.mxu0 0.0
    %1580 = vmatprep.subr.mxu0 0.0
    %1581 = vmatpush1.msra.mxu0 0.0
    %1582 = vmatprep.subr.mxu0 0.0
    %1583 = vmatpush1.msra.mxu0 0.0
    %1584 = vmatprep.subr.mxu0 0.0
    %1585 = vmatpush1.msra.mxu0 0.0
    %1586 = vmatprep.subr.mxu0 0.0
    %1587 = vmatpush1.msra.mxu0 0.0
    %1588 = vmatprep.subr.mxu0 0.0
    %1589 = vmatpush1.msra.mxu0 0.0
    %1590 = vmatprep.subr.mxu0 0.0
    %1591 = vmatpush1.msra.mxu0 0.0
    %1592 = vmatprep.subr.mxu0 0.0
    %1593 = vmatpush1.msra.mxu0 0.0
    %1594 = vmatprep.subr.mxu0 0.0
    %1595 = vmatpush1.msra.mxu0 0.0
    %1596 = vmatprep.subr.mxu0 0.0
    %1597 = vmatpush1.msra.mxu0 0.0
    %1598 = vmatprep.subr.mxu0 0.0
    %1599 = vmatpush1.msra.mxu0 0.0
    %1600 = vmatprep.subr.mxu0 0.0
    %1601 = vmatpush1.msra.mxu0 0.0
    %1602 = vmatprep.subr.mxu0 0.0
    %1603 = vmatpush1.msra.mxu0 0.0
    %1604 = vmatprep.subr.mxu0 0.0
    %1605 = vmatpush1.msra.mxu0 0.0
    %1606 = vmatprep.subr.mxu0 0.0
    %1607 = vmatpush1.msra.mxu0 0.0
    %1608 = vmatprep.subr.mxu0 0.0
    %1609 = vmatpush1.msra.mxu0 0.0
    %1610 = vmatprep.subr.mxu0 0.0
    %1611 = vmatpush1.msra.mxu0 0.0
    %1612 = vmatprep.subr.mxu0 0.0
    %1613 = vmatpush1.msra.mxu0 0.0
    %1614 = vmatprep.mubr.f32.mxu0 0.0
    %1615 = vmatmul.mubr.f32.gmra.mrb[0].mxu0 %v1548
    %v1616 = vpop.f32.mrb[0].mxu0
    %v1617 = vadd.f32 %v1547, %v1616
    %v1618 = vpop.f32.mrb[0].mxu0
    %1619 = vdwg.mxu0
    %v1620 = vld [vmem:[%s495 + $0x8] sm:$0xff]
    %1621 = vrot.lane.b32.xlu0 %v1536, 64
    %v1622 = vpop.permute.xlu0 %1621
    %v1623 = vsel %vm285, %v1622, 0
    %1625 = vmatprep.subr.mxu0 0.0
    %1626 = vmatpush1.msra.mxu0 %v277
    %1627 = vmatprep.subr.mxu0 0.0
    %1628 = vmatpush1.msra.mxu0 %v278
    %1629 = vmatprep.subr.mxu0 0.0
    %1630 = vmatpush1.msra.mxu0 %v279
    %1631 = vmatprep.subr.mxu0 0.0
    %1632 = vmatpush1.msra.mxu0 %v280
    %1633 = vmatprep.subr.mxu0 0.0
    %1634 = vmatpush1.msra.mxu0 0.0
    %1635 = vmatprep.subr.mxu0 0.0
    %1636 = vmatpush1.msra.mxu0 0.0
    %1637 = vmatprep.subr.mxu0 0.0
    %1638 = vmatpush1.msra.mxu0 0.0
    %1639 = vmatprep.subr.mxu0 0.0
    %1640 = vmatpush1.msra.mxu0 0.0
    %1641 = vmatprep.subr.mxu0 0.0
    %1642 = vmatpush1.msra.mxu0 0.0
    %1643 = vmatprep.subr.mxu0 0.0
    %1644 = vmatpush1.msra.mxu0 0.0
    %1645 = vmatprep.subr.mxu0 0.0
    %1646 = vmatpush1.msra.mxu0 0.0
    %1647 = vmatprep.subr.mxu0 0.0
    %1648 = vmatpush1.msra.mxu0 0.0
    %1649 = vmatprep.subr.mxu0 0.0
    %1650 = vmatpush1.msra.mxu0 0.0
    %1651 = vmatprep.subr.mxu0 0.0
    %1652 = vmatpush1.msra.mxu0 0.0
    %1653 = vmatprep.subr.mxu0 0.0
    %1654 = vmatpush1.msra.mxu0 0.0
    %1655 = vmatprep.subr.mxu0 0.0
    %1656 = vmatpush1.msra.mxu0 0.0
    %1657 = vmatprep.subr.mxu0 0.0
    %1658 = vmatpush1.msra.mxu0 0.0
    %1659 = vmatprep.subr.mxu0 0.0
    %1660 = vmatpush1.msra.mxu0 0.0
    %1661 = vmatprep.subr.mxu0 0.0
    %1662 = vmatpush1.msra.mxu0 0.0
    %1663 = vmatprep.subr.mxu0 0.0
    %1664 = vmatpush1.msra.mxu0 0.0
    %1665 = vmatprep.subr.mxu0 0.0
    %1666 = vmatpush1.msra.mxu0 0.0
    %1667 = vmatprep.subr.mxu0 0.0
    %1668 = vmatpush1.msra.mxu0 0.0
    %1669 = vmatprep.subr.mxu0 0.0
    %1670 = vmatpush1.msra.mxu0 0.0
    %1671 = vmatprep.subr.mxu0 0.0
    %1672 = vmatpush1.msra.mxu0 0.0
    %1673 = vmatprep.subr.mxu0 0.0
    %1674 = vmatpush1.msra.mxu0 0.0
    %1675 = vmatprep.subr.mxu0 0.0
    %1676 = vmatpush1.msra.mxu0 0.0
    %1677 = vmatprep.subr.mxu0 0.0
    %1678 = vmatpush1.msra.mxu0 0.0
    %1679 = vmatprep.subr.mxu0 0.0
    %1680 = vmatpush1.msra.mxu0 0.0
    %1681 = vmatprep.subr.mxu0 0.0
    %1682 = vmatpush1.msra.mxu0 0.0
    %1683 = vmatprep.subr.mxu0 0.0
    %1684 = vmatpush1.msra.mxu0 0.0
    %1685 = vmatprep.subr.mxu0 0.0
    %1686 = vmatpush1.msra.mxu0 0.0
    %1687 = vmatprep.subr.mxu0 0.0
    %1688 = vmatpush1.msra.mxu0 0.0
    %1689 = vmatprep.mubr.f32.mxu0 0.0
    %1690 = vmatmul.mubr.f32.gmra.mrb[0].mxu0 %v1623
    %v1691 = vpop.f32.mrb[0].mxu0
    %v1692 = vadd.f32 %v1620, %v1691
    %v1693 = vpop.f32.mrb[0].mxu0
    %1694 = vdwg.mxu0
    %v1695 = vxor.u32 %v1617, 2147483648
    %v1696 = vmul.f32 %v1695, 1.442695
    %v1697 = vpow.pop %v1696
    %v1698 = vadd.f32 %v1697, 1.0
    %v1699 = vrcp.pop %v1698
    %v1700 = vmul.f32 1.0, %v1699
    %v1701 = vtanh.pop %v1617
    %v1702 = vxor.u32 %v1692, 2147483648
    %v1703 = vmul.f32 %v1702, 1.442695
    %v1704 = vpow.pop %v1703
    %v1705 = vadd.f32 %v1704, 1.0
    %v1706 = vrcp.pop %v1705
    %v1707 = vmul.f32 1.0, %v1706
    %v1708 = vtanh.pop %v1692
    %v1709 = vmul.f32 %v1700, %v1513
    %1711 = vrot.lane.b32.xlu0 %v1701, 32
    %v1712 = vpop.permute.xlu0 %1711
    %v1714 = vmul.f32 %v1700, %v1712
    %1716 = vrot.lane.b32.xlu0 %v1714, 32
    %v1717 = vpop.permute.xlu0 %1716
    %v1719 = vadd.f32 %v1709, %v1717
    %v1720 = vtanh.pop %v1719
    %1722 = vrot.lane.b32.xlu0 %v1720, 32
    %v1723 = vpop.permute.xlu0 %1722
    %v1725 = vmul.f32 %v1700, %v1723
    %v1726 = vmul.f32 %v1707, %v1530
    %1728 = vrot.lane.b32.xlu0 %v1708, 32
    %v1729 = vpop.permute.xlu0 %1728
    %v1731 = vmul.f32 %v1707, %v1729
    %1733 = vrot.lane.b32.xlu0 %v1731, 32
    %v1734 = vpop.permute.xlu0 %1733
    %v1736 = vadd.f32 %v1726, %v1734
    %v1737 = vtanh.pop %v1736
    %1739 = vrot.lane.b32.xlu0 %v1737, 32
    %v1740 = vpop.permute.xlu0 %1739
    %v1742 = vmul.f32 %v1707, %v1740
    %1744 = vrot.lane.b32.xlu0 %v1725, 64
    %v1745 = vpop.permute.xlu0 %1744
    %1747 = vst.msk [vmem:[%s705] sm:$0xff] %vm285, %v1745
    %1749 = vrot.lane.b32.xlu0 %v1742, 96
    %v1750 = vpop.permute.xlu0 %1749
    %1752 = vst.msk [vmem:[%s699] sm:$0xff] %vm491, %v1750
    %v1753 = vld [vmem:[%s361] sm:$0xff]
    %v1754 = vsel %vm285, %v1745, 0
    %1756 = vmatprep.subr.mxu0 0.0
    %1757 = vmatpush1.msra.mxu0 %v273
    %1758 = vmatprep.subr.mxu0 0.0
    %1759 = vmatpush1.msra.mxu0 %v274
    %1760 = vmatprep.subr.mxu0 0.0
    %1761 = vmatpush1.msra.mxu0 %v275
    %1762 = vmatprep.subr.mxu0 0.0
    %1763 = vmatpush1.msra.mxu0 %v276
    %1764 = vmatprep.subr.mxu0 0.0
    %1765 = vmatpush1.msra.mxu0 0.0
    %1766 = vmatprep.subr.mxu0 0.0
    %1767 = vmatpush1.msra.mxu0 0.0
    %1768 = vmatprep.subr.mxu0 0.0
    %1769 = vmatpush1.msra.mxu0 0.0
    %1770 = vmatprep.subr.mxu0 0.0
    %1771 = vmatpush1.msra.mxu0 0.0
    %1772 = vmatprep.subr.mxu0 0.0
    %1773 = vmatpush1.msra.mxu0 0.0
    %1774 = vmatprep.subr.mxu0 0.0
    %1775 = vmatpush1.msra.mxu0 0.0
    %1776 = vmatprep.subr.mxu0 0.0
    %1777 = vmatpush1.msra.mxu0 0.0
    %1778 = vmatprep.subr.mxu0 0.0
    %1779 = vmatpush1.msra.mxu0 0.0
    %1780 = vmatprep.subr.mxu0 0.0
    %1781 = vmatpush1.msra.mxu0 0.0
    %1782 = vmatprep.subr.mxu0 0.0
    %1783 = vmatpush1.msra.mxu0 0.0
    %1784 = vmatprep.subr.mxu0 0.0
    %1785 = vmatpush1.msra.mxu0 0.0
    %1786 = vmatprep.subr.mxu0 0.0
    %1787 = vmatpush1.msra.mxu0 0.0
    %1788 = vmatprep.subr.mxu0 0.0
    %1789 = vmatpush1.msra.mxu0 0.0
    %1790 = vmatprep.subr.mxu0 0.0
    %1791 = vmatpush1.msra.mxu0 0.0
    %1792 = vmatprep.subr.mxu0 0.0
    %1793 = vmatpush1.msra.mxu0 0.0
    %1794 = vmatprep.subr.mxu0 0.0
    %1795 = vmatpush1.msra.mxu0 0.0
    %1796 = vmatprep.subr.mxu0 0.0
    %1797 = vmatpush1.msra.mxu0 0.0
    %1798 = vmatprep.subr.mxu0 0.0
    %1799 = vmatpush1.msra.mxu0 0.0
    %1800 = vmatprep.subr.mxu0 0.0
    %1801 = vmatpush1.msra.mxu0 0.0
    %1802 = vmatprep.subr.mxu0 0.0
    %1803 = vmatpush1.msra.mxu0 0.0
    %1804 = vmatprep.subr.mxu0 0.0
    %1805 = vmatpush1.msra.mxu0 0.0
    %1806 = vmatprep.subr.mxu0 0.0
    %1807 = vmatpush1.msra.mxu0 0.0
    %1808 = vmatprep.subr.mxu0 0.0
    %1809 = vmatpush1.msra.mxu0 0.0
    %1810 = vmatprep.subr.mxu0 0.0
    %1811 = vmatpush1.msra.mxu0 0.0
    %1812 = vmatprep.subr.mxu0 0.0
    %1813 = vmatpush1.msra.mxu0 0.0
    %1814 = vmatprep.subr.mxu0 0.0
    %1815 = vmatpush1.msra.mxu0 0.0
    %1816 = vmatprep.subr.mxu0 0.0
    %1817 = vmatpush1.msra.mxu0 0.0
    %1818 = vmatprep.subr.mxu0 0.0
    %1819 = vmatpush1.msra.mxu0 0.0
    %1820 = vmatprep.mubr.f32.mxu0 0.0
    %1821 = vmatmul.mubr.f32.gmra.mrb[0].mxu0 %v1754
    %v1822 = vpop.f32.mrb[0].mxu0
    %v1823 = vadd.f32 %v1753, %v1822
    %v1824 = vpop.f32.mrb[0].mxu0
    %1825 = vdwg.mxu0
    %v1826 = vld [vmem:[%s283 + $0x8] sm:$0xff]
    %1827 = vrot.lane.b32.xlu0 %v1742, 64
    %v1828 = vpop.permute.xlu0 %1827
    %v1829 = vsel %vm285, %v1828, 0
    %1831 = vmatprep.subr.mxu0 0.0
    %1832 = vmatpush1.msra.mxu0 %v277
    %1833 = vmatprep.subr.mxu0 0.0
    %1834 = vmatpush1.msra.mxu0 %v278
    %1835 = vmatprep.subr.mxu0 0.0
    %1836 = vmatpush1.msra.mxu0 %v279
    %1837 = vmatprep.subr.mxu0 0.0
    %1838 = vmatpush1.msra.mxu0 %v280
    %1839 = vmatprep.subr.mxu0 0.0
    %1840 = vmatpush1.msra.mxu0 0.0
    %1841 = vmatprep.subr.mxu0 0.0
    %1842 = vmatpush1.msra.mxu0 0.0
    %1843 = vmatprep.subr.mxu0 0.0
    %1844 = vmatpush1.msra.mxu0 0.0
    %1845 = vmatprep.subr.mxu0 0.0
    %1846 = vmatpush1.msra.mxu0 0.0
    %1847 = vmatprep.subr.mxu0 0.0
    %1848 = vmatpush1.msra.mxu0 0.0
    %1849 = vmatprep.subr.mxu0 0.0
    %1850 = vmatpush1.msra.mxu0 0.0
    %1851 = vmatprep.subr.mxu0 0.0
    %1852 = vmatpush1.msra.mxu0 0.0
    %1853 = vmatprep.subr.mxu0 0.0
    %1854 = vmatpush1.msra.mxu0 0.0
    %1855 = vmatprep.subr.mxu0 0.0
    %1856 = vmatpush1.msra.mxu0 0.0
    %1857 = vmatprep.subr.mxu0 0.0
    %1858 = vmatpush1.msra.mxu0 0.0
    %1859 = vmatprep.subr.mxu0 0.0
    %1860 = vmatpush1.msra.mxu0 0.0
    %1861 = vmatprep.subr.mxu0 0.0
    %1862 = vmatpush1.msra.mxu0 0.0
    %1863 = vmatprep.subr.mxu0 0.0
    %1864 = vmatpush1.msra.mxu0 0.0
    %1865 = vmatprep.subr.mxu0 0.0
    %1866 = vmatpush1.msra.mxu0 0.0
    %1867 = vmatprep.subr.mxu0 0.0
    %1868 = vmatpush1.msra.mxu0 0.0
    %1869 = vmatprep.subr.mxu0 0.0
    %1870 = vmatpush1.msra.mxu0 0.0
    %1871 = vmatprep.subr.mxu0 0.0
    %1872 = vmatpush1.msra.mxu0 0.0
    %1873 = vmatprep.subr.mxu0 0.0
    %1874 = vmatpush1.msra.mxu0 0.0
    %1875 = vmatprep.subr.mxu0 0.0
    %1876 = vmatpush1.msra.mxu0 0.0
    %1877 = vmatprep.subr.mxu0 0.0
    %1878 = vmatpush1.msra.mxu0 0.0
    %1879 = vmatprep.subr.mxu0 0.0
    %1880 = vmatpush1.msra.mxu0 0.0
    %1881 = vmatprep.subr.mxu0 0.0
    %1882 = vmatpush1.msra.mxu0 0.0
    %1883 = vmatprep.subr.mxu0 0.0
    %1884 = vmatpush1.msra.mxu0 0.0
    %1885 = vmatprep.subr.mxu0 0.0
    %1886 = vmatpush1.msra.mxu0 0.0
    %1887 = vmatprep.subr.mxu0 0.0
    %1888 = vmatpush1.msra.mxu0 0.0
    %1889 = vmatprep.subr.mxu0 0.0
    %1890 = vmatpush1.msra.mxu0 0.0
    %1891 = vmatprep.subr.mxu0 0.0
    %1892 = vmatpush1.msra.mxu0 0.0
    %1893 = vmatprep.subr.mxu0 0.0
    %1894 = vmatpush1.msra.mxu0 0.0
    %1895 = vmatprep.mubr.f32.mxu0 0.0
    %1896 = vmatmul.mubr.f32.gmra.mrb[0].mxu0 %v1829
    %v1897 = vpop.f32.mrb[0].mxu0
    %v1898 = vadd.f32 %v1826, %v1897
    %v1899 = vpop.f32.mrb[0].mxu0
    %1900 = vdwg.mxu0
    %v1901 = vxor.u32 %v1823, 2147483648
    %v1902 = vmul.f32 %v1901, 1.442695
    %v1903 = vpow.pop %v1902
    %v1904 = vadd.f32 %v1903, 1.0
    %v1905 = vrcp.pop %v1904
    %v1906 = vmul.f32 1.0, %v1905
    %v1907 = vtanh.pop %v1823
    %v1908 = vxor.u32 %v1898, 2147483648
    %v1909 = vmul.f32 %v1908, 1.442695
    %v1910 = vpow.pop %v1909
    %v1911 = vadd.f32 %v1910, 1.0
    %v1912 = vrcp.pop %v1911
    %v1913 = vmul.f32 1.0, %v1912
    %v1914 = vtanh.pop %v1898
    %v1915 = vmul.f32 %v1906, %v1719
    %1917 = vrot.lane.b32.xlu0 %v1907, 32
    %v1918 = vpop.permute.xlu0 %1917
    %v1920 = vmul.f32 %v1906, %v1918
    %1922 = vrot.lane.b32.xlu0 %v1920, 32
    %v1923 = vpop.permute.xlu0 %1922
    %v1925 = vadd.f32 %v1915, %v1923
    %v1926 = vtanh.pop %v1925
    %1928 = vrot.lane.b32.xlu0 %v1926, 32
    %v1929 = vpop.permute.xlu0 %1928
    %v1931 = vmul.f32 %v1906, %v1929
    %v1932 = vmul.f32 %v1913, %v1736
    %1934 = vrot.lane.b32.xlu0 %v1914, 32
    %v1935 = vpop.permute.xlu0 %1934
    %v1937 = vmul.f32 %v1913, %v1935
    %1939 = vrot.lane.b32.xlu0 %v1937, 32
    %v1940 = vpop.permute.xlu0 %1939
    %v1942 = vadd.f32 %v1932, %v1940
    %v1943 = vtanh.pop %v1942
    %1945 = vrot.lane.b32.xlu0 %v1943, 32
    %v1946 = vpop.permute.xlu0 %1945
    %v1948 = vmul.f32 %v1913, %v1946
    %1950 = vrot.lane.b32.xlu0 %v1931, 64
    %v1951 = vpop.permute.xlu0 %1950
    %1953 = vst.msk [vmem:[%s490] sm:$0xff] %vm285, %v1951
    %1955 = vrot.lane.b32.xlu0 %v1948, 96
    %v1956 = vpop.permute.xlu0 %1955
    %1958 = vst.msk [vmem:[#allocation3] sm:$0xff] %vm491, %v1956
    %v1959 = vld [vmem:[#allocation3] sm:$0xff]
    %v1960 = vld [vmem:[#allocation3 + $0x8] sm:$0xff]
    %v1961 = vld [vmem:[#allocation3 + $0x10] sm:$0xff]
    %v1962 = vld [vmem:[#allocation3 + $0x18] sm:$0xff]
    %v1963 = vld [vmem:[#allocation3 + $0x20] sm:$0xff]
    %v1964 = vld [vmem:[#allocation3 + $0x28] sm:$0xff]
    %v1965 = vld [vmem:[#allocation3 + $0x30] sm:$0xff]
    %v1966 = vld [vmem:[#allocation3 + $0x38] sm:$0xff]
    %v1967 = vpack.c.bf16 %v1960, %v1959
    %v1968 = vpack.c.bf16 %v1962, %v1961
    %v1969 = vpack.c.bf16 %v1964, %v1963
    %v1970 = vpack.c.bf16 %v1966, %v1965
    %v1971 = vld [vmem:[#allocation13] sm:$0xf]
    %v1972 = vld [vmem:[#allocation13 + $0x4] sm:$0xf]
    %v1973 = vld [vmem:[#allocation13 + $0x8] sm:$0xf]
    %v1974 = vld [vmem:[#allocation13 + $0xc] sm:$0xf]
    %v1975 = vld [vmem:[#allocation13 + $0x10] sm:$0xf]
    %v1976 = vld [vmem:[#allocation13 + $0x14] sm:$0xf]
    %v1977 = vld [vmem:[#allocation13 + $0x18] sm:$0xf]
    %v1978 = vld [vmem:[#allocation13 + $0x1c] sm:$0xf]
    %v1979 = vld [vmem:[#allocation15] sm:$0x1]
    %v1981 = vlaneseq
    %v1982 = vshrl.u32 %v1981, 7
    %v1983 = vsub.s32 0, %v1982
    %v1984 = vrot.slane %v1979, %v1983
    %v1994 = vunpack.c.l.b16 %v1971
    %v1995 = vunpack.c.l.b16 %v1972
    %v1996 = vunpack.c.l.b16 %v1973
    %v1997 = vunpack.c.l.b16 %v1974
    %v1998 = vunpack.c.l.b16 %v1975
    %v1999 = vunpack.c.l.b16 %v1976
    %v2000 = vunpack.c.l.b16 %v1977
    %v2001 = vunpack.c.l.b16 %v1978
    %v2002 = vpack.c.b16 %v1995, %v1994
    %v2003 = vpack.c.b16 %v1997, %v1996
    %v2004 = vpack.c.b16 %v1999, %v1998
    %v2005 = vpack.c.b16 %v2001, %v2000
    %vm2010 = vcmask 523264
    %v2012 = vsel %vm2010, %v1967, 0
    %v2015 = vsel %vm2010, %v1968, 0
    %v2018 = vsel %vm2010, %v1969, 0
    %v2021 = vsel %vm2010, %v1970, 0
    %2023 = vmatprep.subr.bf16.mxu0 0
    %2024 = vmatpush1.bf16.msra.mxu0 %v2002
    %2025 = vmatprep.subr.bf16.mxu0 0
    %2026 = vmatpush1.bf16.msra.mxu0 %v2003
    %2027 = vmatprep.subr.bf16.mxu0 0
    %2028 = vmatpush1.bf16.msra.mxu0 %v2004
    %2029 = vmatprep.subr.bf16.mxu0 0
    %2030 = vmatpush1.bf16.msra.mxu0 %v2005
    %2031 = vmatprep.subr.bf16.mxu0 0
    %2032 = vmatpush1.bf16.msra.mxu0 0
    %2033 = vmatprep.subr.bf16.mxu0 0
    %2034 = vmatpush1.bf16.msra.mxu0 0
    %2035 = vmatprep.subr.bf16.mxu0 0
    %2036 = vmatpush1.bf16.msra.mxu0 0
    %2037 = vmatprep.subr.bf16.mxu0 0
    %2038 = vmatpush1.bf16.msra.mxu0 0
    %2039 = vmatprep.subr.bf16.mxu0 0
    %2040 = vmatpush1.bf16.msra.mxu0 0
    %2041 = vmatprep.subr.bf16.mxu0 0
    %2042 = vmatpush1.bf16.msra.mxu0 0
    %2043 = vmatprep.subr.bf16.mxu0 0
    %2044 = vmatpush1.bf16.msra.mxu0 0
    %2045 = vmatprep.subr.bf16.mxu0 0
    %2046 = vmatpush1.bf16.msra.mxu0 0
    %2047 = vmatprep.subr.bf16.mxu0 0
    %2048 = vmatpush1.bf16.msra.mxu0 0
    %2049 = vmatprep.subr.bf16.mxu0 0
    %2050 = vmatpush1.bf16.msra.mxu0 0
    %2051 = vmatprep.subr.bf16.mxu0 0
    %2052 = vmatpush1.bf16.msra.mxu0 0
    %2053 = vmatprep.subr.bf16.mxu0 0
    %2054 = vmatpush1.bf16.msra.mxu0 0
    %2055 = vmatprep.mubr.bf16.mxu0 0
    %2056 = vmatmul.mubr.bf16.gmra.mrb[0].mxu0 %v2012
    %v2057 = vpop.f32.mrb[0].mxu0
    %v2058 = vadd.f32 %v1984, %v2057
    %v2059 = vpop.f32.mrb[0].mxu0
    %v2060 = vpop.f32.mrb[0].mxu0
    %v2061 = vadd.f32 %v1984, %v2060
    %v2062 = vpop.f32.mrb[0].mxu0
    %2063 = vmatprep.mubr.bf16.mxu0 0
    %2064 = vmatmul.mubr.bf16.gmra.mrb[0].mxu0 %v2015
    %v2065 = vpop.f32.mrb[0].mxu0
    %v2066 = vadd.f32 %v1984, %v2065
    %v2067 = vpop.f32.mrb[0].mxu0
    %v2068 = vpop.f32.mrb[0].mxu0
    %v2069 = vadd.f32 %v1984, %v2068
    %v2070 = vpop.f32.mrb[0].mxu0
    %2071 = vmatprep.mubr.bf16.mxu0 0
    %2072 = vmatmul.mubr.bf16.gmra.mrb[0].mxu0 %v2018
    %v2073 = vpop.f32.mrb[0].mxu0
    %v2074 = vadd.f32 %v1984, %v2073
    %v2075 = vpop.f32.mrb[0].mxu0
    %v2076 = vpop.f32.mrb[0].mxu0
    %v2077 = vadd.f32 %v1984, %v2076
    %v2078 = vpop.f32.mrb[0].mxu0
    %2079 = vmatprep.mubr.bf16.mxu0 0
    %2080 = vmatmul.mubr.bf16.gmra.mrb[0].mxu0 %v2021
    %v2081 = vpop.f32.mrb[0].mxu0
    %v2082 = vadd.f32 %v1984, %v2081
    %v2083 = vpop.f32.mrb[0].mxu0
    %v2084 = vpop.f32.mrb[0].mxu0
    %v2085 = vadd.f32 %v1984, %v2084
    %v2086 = vpop.f32.mrb[0].mxu0
    %2087 = vdwg.mxu0
    %2088 = vst [vmem:[#allocation16] sm:$0xff] %v2058
    %2089 = vst [vmem:[#allocation16 + $0x8] sm:$0xff] %v2061
    %2090 = vst [vmem:[#allocation16 + $0x10] sm:$0xff] %v2066
    %2091 = vst [vmem:[#allocation16 + $0x18] sm:$0xff] %v2069
    %2092 = vst [vmem:[#allocation16 + $0x20] sm:$0xff] %v2074
    %2093 = vst [vmem:[#allocation16 + $0x28] sm:$0xff] %v2077
    %2094 = vst [vmem:[#allocation16 + $0x30] sm:$0xff] %v2082
    %2095 = vst [vmem:[#allocation16 + $0x38] sm:$0xff] %v2085
    // Predicated region
    $region58: #{tpu_custom_call.1} parent=1 // pred_check
      _
    $region59: #{tpu_custom_call.1} parent=1 // pred_check_branch
      %2097 = sbr.rel (0) target = $region61
    $region60: #{tpu_custom_call.1} parent=1 // pred_region
      %s2099 = ssub.s32 1024, 1024
      %2100 = vsyncadd [#allocation6], %s2099
      %s2101 = sshll.u32 [#allocation16], 4
      %s2102 = int_to_ptr.vmem [resolvable:$true] %s2101
      %2107 = dma.vmem_to_hbm [thread:$0]  %s2102, 1024, %s7, [#allocation6], 128, 128, 8
    $region61: #{tpu_custom_call.1} parent=1 // pred_fallthru
      _
    // Predicated region
    $region62: #{tpu_custom_call.1} parent=1 // pred_check
      _
    $region63: #{tpu_custom_call.1} parent=1 // pred_check_branch
      %2109 = sbr.rel (0) target = $region65
    $region64: #{tpu_custom_call.1} parent=1 // pred_region
      %2110 = dma.done [#allocation6], 1024
    $region65: #{tpu_custom_call.1} parent=1 // pred_fallthru
      _
    %2111 = vsyncpa [#allocation5], 1
    %2112 = vsyncpa [#allocation8], 1
    %2113 = vsyncpa [#allocation11], 1
    %2114 = vsyncpa [#allocation14], 1
    %2115 = vsyncpa [#allocation6], 1

</llo_original>
